<compile_context>
chip_gen: v7x
topology: tpu7x:2x2x1
jax: 0.10.0
libtpu: 0.0.40
codegen_flags: <defaults>
</compile_context>

<pallas_src>
import jax
import jax.numpy as jnp
from jax.experimental import pallas as pl
from jax.experimental.pallas import tpu as pltpu  # noqa: F401  (kept for TPU-specific tuning hooks)


# ---------------------------------------------------------------------------
# Fused forward kernel
# ---------------------------------------------------------------------------
def _generator_fused_kernel(
    x_ref,            # [N, Din]        f32
    w0_ref, b0_ref,   # [Din, 64] bf16, [1, 64] f32
    a_ref,            # [R*N, N]        bf16   (rows blocked by relation)
    w1_ref, b1_ref,   # [R, 64, 128] bf16, [1, 128] f32  (sum of per-rel biases)
    w2_ref, b2_ref,   # [R, 128, 256] bf16, [1, 256] f32
    w3_ref, b3_ref,   # [R, 256, 64] bf16, [1, 64] f32
    uh_ref, uwt_ref,  # [2N, N] bf16, [256, 512] bf16
    y_ref,            # [N, 64]  f32
    up_ref,           # [2N, 512] f32
):
    n = x_ref.shape[0]
    n_rels = w1_ref.shape[0]

    # --- initialization: nn.Linear(input_dim, 64) ---------------------------
    x0 = jnp.dot(x_ref[...].astype(jnp.bfloat16), w0_ref[...],
                 preferred_element_type=jnp.float32) + b0_ref[...]

    a_all = a_ref[...]  # [R*N, N] bf16, stays in vregs for all three convs

    def hetero_conv_a_first(x_f32, w_r, b_r):
        # fin < fout: (A @ X) @ W.  Single wide-M matmul for the aggregation,
        # then R small K=fin matmuls accumulated in f32 (static unrolled loop).
        fout = w_r.shape[2]
        ax_all = jnp.dot(a_all, x_f32.astype(jnp.bfloat16),
                         preferred_element_type=jnp.float32)      # [R*N, fin]
        acc = jnp.zeros((n, fout), jnp.float32)
        for r in range(n_rels):
            acc = acc + jnp.dot(
                ax_all[r * n:(r + 1) * n].astype(jnp.bfloat16), w_r[r],
                preferred_element_type=jnp.float32)
        return acc + b_r[...]

    def hetero_conv_w_first(x_f32, w_r, b_r):
        # fin > fout: A @ (X @ W) keeps the N^2-scaled matmul at width fout.
        fout = w_r.shape[2]
        xb = x_f32.astype(jnp.bfloat16)
        acc = jnp.zeros((n, fout), jnp.float32)
        for r in range(n_rels):
            xw = jnp.dot(xb, w_r[r], preferred_element_type=jnp.float32)
            acc = acc + jnp.dot(a_all[r * n:(r + 1) * n],
                                xw.astype(jnp.bfloat16),
                                preferred_element_type=jnp.float32)
        return acc + b_r[...]

    x1 = hetero_conv_a_first(x0, w1_ref, b1_ref)   # [N, 128]
    x2 = hetero_conv_a_first(x1, w2_ref, b2_ref)   # [N, 256]

    # --- nn.Upsample(scale=2, bilinear, align_corners=False) ----------------
    t = jnp.dot(uh_ref[...], x2.astype(jnp.bfloat16),
                preferred_element_type=jnp.float32)               # [2N, 256]
    up_ref[...] = jnp.dot(t.astype(jnp.bfloat16), uwt_ref[...],
                          preferred_element_type=jnp.float32)     # [2N, 512]

    # conv3 on the pre-upsample features (see TODO(synk) at module level).
    y_ref[...] = hetero_conv_w_first(x2, w3_ref, b3_ref)          # [N, 64]


# ---------------------------------------------------------------------------
# Host-side helpers
# ---------------------------------------------------------------------------
def _interp_matrix(n_in, scale=2):
    """Row-interpolation matrix matching PyTorch bilinear, align_corners=False."""
    n_out = n_in * scale
    o = jnp.arange(n_out, dtype=jnp.float32)
    src = (o + 0.5) / float(scale) - 0.5
    src = jnp.maximum(src, 0.0)
    i0 = jnp.minimum(jnp.floor(src).astype(jnp.int32), n_in - 1)
    i1 = jnp.minimum(i0 + 1, n_in - 1)
    frac = src - i0.astype(jnp.float32)
    m = jnp.zeros((n_out, n_in), dtype=jnp.float32)
    rows = jnp.arange(n_out)
    m = m.at[rows, i0].add(1.0 - frac)
    m = m.at[rows, i1].add(frac)
    return m


def normalize_adj(a):
    """a[src, dst] = 1 for edge src->dst.  Returns Anorm[dst, src] so that
    GraphConv(norm='both') message passing is Anorm @ X (degrees clamped >= 1)."""
    dout = jnp.maximum(a.sum(axis=1), 1.0)
    din = jnp.maximum(a.sum(axis=0), 1.0)
    return (din[:, None] ** -0.5) * a.T * (dout[None, :] ** -0.5)


# ---------------------------------------------------------------------------
# Generator
# ---------------------------------------------------------------------------
class Generator:
    def __init__(self, input_dim, rel_names, key):
        r = len(rel_names)
        ks = jax.random.split(key, 7)

        def init(k, shape, scale):
            return (scale * jax.random.normal(k, shape)).astype(jnp.float32)

        # nn.Linear(input_dim, 64)
        self.w0 = init(ks[0], (input_dim, 64), input_dim ** -0.5)
        self.b0 = jnp.zeros((64,), jnp.float32)
        # conv1: {rel: GraphConv(64, 128)}
        self.w1 = init(ks[1], (r, 64, 128), 64 ** -0.5)
        self.b1 = init(ks[2], (r, 128), 0.01)
        # conv2: {rel: GraphConv(128, 256)}
        self.w2 = init(ks[3], (r, 128, 256), 128 ** -0.5)
        self.b2 = init(ks[4], (r, 256), 0.01)
        # conv3: {rel: GraphConv(256, 64)}
        self.w3 = init(ks[5], (r, 256, 64), 256 ** -0.5)
        self.b3 = init(ks[6], (r, 64), 0.01)

        # bf16 matmul operands (f32 accumulation happens inside the kernel);
        # HeteroGraphConv(aggregate='sum'): total bias = sum of per-rel biases.
        self.w0_bf = self.w0.astype(jnp.bfloat16)
        self.w1_bf = self.w1.astype(jnp.bfloat16)
        self.w2_bf = self.w2.astype(jnp.bfloat16)
        self.w3_bf = self.w3.astype(jnp.bfloat16)
        self.b0_2d = self.b0.reshape(1, -1)
        self.b1_sum = jnp.sum(self.b1, axis=0, keepdims=True)
        self.b2_sum = jnp.sum(self.b2, axis=0, keepdims=True)
        self.b3_sum = jnp.sum(self.b3, axis=0, keepdims=True)

    def __call__(self, anorm, input_data):
        r, n, _ = anorm.shape
        f2 = self.w2.shape[2]                                  # 256
        a_vcat = anorm.reshape(r * n, n).astype(jnp.bfloat16)  # rows blocked by rel
        uh = _interp_matrix(n, 2).astype(jnp.bfloat16)         # [2N, N]
        uwt = _interp_matrix(f2, 2).T.astype(jnp.bfloat16)     # [256, 512]

        y, up = pl.pallas_call(
            _generator_fused_kernel,
            out_shape=(
                jax.ShapeDtypeStruct((n, self.w3.shape[2]), jnp.float32),
                jax.ShapeDtypeStruct((2 * n, 2 * f2), jnp.float32),
            ),
        )(input_data, self.w0_bf, self.b0_2d,
          a_vcat,
          self.w1_bf, self.b1_sum,
          self.w2_bf, self.b2_sum,
          self.w3_bf, self.b3_sum,
          uh, uwt)
        return y, up


# ---------------------------------------------------------------------------
# Pure-JAX reference (f32 math on the same bf16-quantized operands)
# ---------------------------------------------------------------------------
def _reference_forward(gen, anorm, x):
    def q(a):
        return a.astype(jnp.bfloat16).astype(jnp.float32)

    r, n, _ = anorm.shape
    a = q(anorm)
    x0 = q(x) @ q(gen.w0) + gen.b0[None, :]

    def hconv(xf, w, b):
        out = jnp.sum(b, axis=0)[None, :]
        for i in range(r):
            out = out + (a[i] @ xf) @ q(w[i])
        return out

    x1 = hconv(x0, gen.w1, gen.b1)
    x2 = hconv(x1, gen.w2, gen.b2)
    uh = _interp_matrix(n, 2)
    uwt = _interp_matrix(gen.w2.shape[2], 2).T
    up = uh @ x2 @ uwt
    y = hconv(x2, gen.w3, gen.b3)
    return y, up


# ---------------------------------------------------------------------------
if __name__ == "__main__":
    key = jax.random.PRNGKey(0)
    rel_names = ["rel_a", "rel_b", "rel_c"]
    n_nodes, input_dim = 8, 16

    k_adj, k_feat, k_par = jax.random.split(key, 3)
    feats = jax.random.normal(k_feat, (n_nodes, input_dim), dtype=jnp.float32)

    adj_keys = jax.random.split(k_adj, len(rel_names))
    adjs = []
    for kk in adj_keys:
        a = (jax.random.uniform(kk, (n_nodes, n_nodes)) < 0.4).astype(jnp.float32)
        a = jnp.maximum(a, jnp.eye(n_nodes, dtype=jnp.float32))  # no zero degree
        adjs.append(normalize_adj(a))
    anorm = jnp.stack(adjs)  # [R, N, N]

    gen = Generator(input_dim, rel_names, k_par)
    y, up = gen(anorm, feats)
    jax.block_until_ready((y, up))

    assert y.shape == (n_nodes, 64), y.shape
    assert up.shape == (2 * n_nodes, 512), up.shape
    assert bool(jnp.all(jnp.isfinite(y))) and bool(jnp.all(jnp.isfinite(up)))

    # Correctness vs pure-JAX reference (loose tolerance: kernel activations are
    # re-quantized to bf16 between layers; parameters are quantized identically).
    y_ref, up_ref = _reference_forward(gen, anorm, feats)

    def rel_err(got, ref):
        return float(jnp.max(jnp.abs(got - ref)) / (jnp.max(jnp.abs(ref)) + 1e-6))

    assert rel_err(y, y_ref) < 0.05, rel_err(y, y_ref)
    assert rel_err(up, up_ref) < 0.05, rel_err(up, up_ref)

    print("KERNEL_OK")
</pallas_src>

<mosaic_0001>
module attributes {stable_mosaic.version = 11 : i64} {
  func.func @_generator_fused_kernel(%arg0: memref<8x16xf32, #tpu.memory_space<vmem>>, %arg1: memref<16x64xbf16, #tpu.memory_space<vmem>>, %arg2: memref<1x64xf32, #tpu.memory_space<vmem>>, %arg3: memref<24x8xbf16, #tpu.memory_space<vmem>>, %arg4: memref<3x64x128xbf16, #tpu.memory_space<vmem>>, %arg5: memref<1x128xf32, #tpu.memory_space<vmem>>, %arg6: memref<3x128x256xbf16, #tpu.memory_space<vmem>>, %arg7: memref<1x256xf32, #tpu.memory_space<vmem>>, %arg8: memref<3x256x64xbf16, #tpu.memory_space<vmem>>, %arg9: memref<1x64xf32, #tpu.memory_space<vmem>>, %arg10: memref<16x8xbf16, #tpu.memory_space<vmem>>, %arg11: memref<256x512xbf16, #tpu.memory_space<vmem>>, %arg12: memref<8x64xf32, #tpu.memory_space<vmem>>, %arg13: memref<16x512xf32, #tpu.memory_space<vmem>>) attributes {dimension_semantics = [], scalar_prefetch = 0 : i64, scratch_operands = 0 : i64, tpu.core_type = #tpu.core_type<tc>} {
    %c0 = arith.constant 0 : index
    %c0_0 = arith.constant 0 : index
    %0 = vector.load %arg0[%c0, %c0_0] : memref<8x16xf32, #tpu.memory_space<vmem>>, vector<8x16xf32>
    %1 = arith.truncf %0 : vector<8x16xf32> to vector<8x16xbf16>
    %c0_1 = arith.constant 0 : index
    %c0_2 = arith.constant 0 : index
    %2 = vector.load %arg1[%c0_1, %c0_2] : memref<16x64xbf16, #tpu.memory_space<vmem>>, vector<16x64xbf16>
    %cst = arith.constant dense<0.000000e+00> : vector<8x64xf32>
    %3 = tpu.matmul %1, %2, %cst {dimension_numbers = #tpu.dot_dimension_numbers<[1], [0], [0], [1], [0, 0, 1, 1], [], []>} : vector<8x16xbf16>, vector<16x64xbf16>, vector<8x64xf32> -> vector<8x64xf32>
    %c0_3 = arith.constant 0 : index
    %c0_4 = arith.constant 0 : index
    %4 = vector.load %arg2[%c0_3, %c0_4] : memref<1x64xf32, #tpu.memory_space<vmem>>, vector<1x64xf32>
    %5 = vector.broadcast %4 : vector<1x64xf32> to vector<8x64xf32>
    %6 = arith.addf %3, %5 : vector<8x64xf32>
    %c0_5 = arith.constant 0 : index
    %c0_6 = arith.constant 0 : index
    %7 = vector.load %arg3[%c0_5, %c0_6] : memref<24x8xbf16, #tpu.memory_space<vmem>>, vector<24x8xbf16>
    %8 = arith.truncf %6 : vector<8x64xf32> to vector<8x64xbf16>
    %cst_7 = arith.constant dense<0.000000e+00> : vector<24x64xf32>
    %9 = tpu.matmul %7, %8, %cst_7 {dimension_numbers = #tpu.dot_dimension_numbers<[1], [0], [0], [1], [0, 0, 1, 1], [], []>} : vector<24x8xbf16>, vector<8x64xbf16>, vector<24x64xf32> -> vector<24x64xf32>
    %cst_8 = arith.constant 0.000000e+00 : f32
    %10 = vector.broadcast %cst_8 : f32 to vector<8x128xf32>
    %11 = vector.extract_strided_slice %9 {offsets = [0, 0], sizes = [8, 64], strides = [1, 1]} : vector<24x64xf32> to vector<8x64xf32>
    %12 = arith.truncf %11 : vector<8x64xf32> to vector<8x64xbf16>
    %c0_9 = arith.constant 0 : index
    %c0_10 = arith.constant 0 : index
    %c0_11 = arith.constant 0 : index
    %13 = vector.load %arg4[%c0_9, %c0_10, %c0_11] : memref<3x64x128xbf16, #tpu.memory_space<vmem>>, vector<1x64x128xbf16>
    %14 = vector.shape_cast %13 : vector<1x64x128xbf16> to vector<64x128xbf16>
    %cst_12 = arith.constant dense<0.000000e+00> : vector<8x128xf32>
    %15 = tpu.matmul %12, %14, %cst_12 {dimension_numbers = #tpu.dot_dimension_numbers<[1], [0], [0], [1], [0, 0, 1, 1], [], []>} : vector<8x64xbf16>, vector<64x128xbf16>, vector<8x128xf32> -> vector<8x128xf32>
    %16 = arith.addf %10, %15 : vector<8x128xf32>
    %17 = vector.extract_strided_slice %9 {offsets = [8, 0], sizes = [8, 64], strides = [1, 1]} : vector<24x64xf32> to vector<8x64xf32>
    %18 = arith.truncf %17 : vector<8x64xf32> to vector<8x64xbf16>
    %c1 = arith.constant 1 : index
    %c0_13 = arith.constant 0 : index
    %c0_14 = arith.constant 0 : index
    %19 = vector.load %arg4[%c1, %c0_13, %c0_14] : memref<3x64x128xbf16, #tpu.memory_space<vmem>>, vector<1x64x128xbf16>
    %20 = vector.shape_cast %19 : vector<1x64x128xbf16> to vector<64x128xbf16>
    %cst_15 = arith.constant dense<0.000000e+00> : vector<8x128xf32>
    %21 = tpu.matmul %18, %20, %cst_15 {dimension_numbers = #tpu.dot_dimension_numbers<[1], [0], [0], [1], [0, 0, 1, 1], [], []>} : vector<8x64xbf16>, vector<64x128xbf16>, vector<8x128xf32> -> vector<8x128xf32>
    %22 = arith.addf %16, %21 : vector<8x128xf32>
    %23 = vector.extract_strided_slice %9 {offsets = [16, 0], sizes = [8, 64], strides = [1, 1]} : vector<24x64xf32> to vector<8x64xf32>
    %24 = arith.truncf %23 : vector<8x64xf32> to vector<8x64xbf16>
    %c2 = arith.constant 2 : index
    %c0_16 = arith.constant 0 : index
    %c0_17 = arith.constant 0 : index
    %25 = vector.load %arg4[%c2, %c0_16, %c0_17] : memref<3x64x128xbf16, #tpu.memory_space<vmem>>, vector<1x64x128xbf16>
    %26 = vector.shape_cast %25 : vector<1x64x128xbf16> to vector<64x128xbf16>
    %cst_18 = arith.constant dense<0.000000e+00> : vector<8x128xf32>
    %27 = tpu.matmul %24, %26, %cst_18 {dimension_numbers = #tpu.dot_dimension_numbers<[1], [0], [0], [1], [0, 0, 1, 1], [], []>} : vector<8x64xbf16>, vector<64x128xbf16>, vector<8x128xf32> -> vector<8x128xf32>
    %28 = arith.addf %22, %27 : vector<8x128xf32>
    %c0_19 = arith.constant 0 : index
    %c0_20 = arith.constant 0 : index
    %29 = vector.load %arg5[%c0_19, %c0_20] : memref<1x128xf32, #tpu.memory_space<vmem>>, vector<1x128xf32>
    %30 = vector.broadcast %29 : vector<1x128xf32> to vector<8x128xf32>
    %31 = arith.addf %28, %30 : vector<8x128xf32>
    %32 = arith.truncf %31 : vector<8x128xf32> to vector<8x128xbf16>
    %cst_21 = arith.constant dense<0.000000e+00> : vector<24x128xf32>
    %33 = tpu.matmul %7, %32, %cst_21 {dimension_numbers = #tpu.dot_dimension_numbers<[1], [0], [0], [1], [0, 0, 1, 1], [], []>} : vector<24x8xbf16>, vector<8x128xbf16>, vector<24x128xf32> -> vector<24x128xf32>
    %cst_22 = arith.constant 0.000000e+00 : f32
    %34 = vector.broadcast %cst_22 : f32 to vector<8x256xf32>
    %35 = vector.extract_strided_slice %33 {offsets = [0, 0], sizes = [8, 128], strides = [1, 1]} : vector<24x128xf32> to vector<8x128xf32>
    %36 = arith.truncf %35 : vector<8x128xf32> to vector<8x128xbf16>
    %c0_23 = arith.constant 0 : index
    %c0_24 = arith.constant 0 : index
    %c0_25 = arith.constant 0 : index
    %37 = vector.load %arg6[%c0_23, %c0_24, %c0_25] : memref<3x128x256xbf16, #tpu.memory_space<vmem>>, vector<1x128x256xbf16>
    %38 = vector.shape_cast %37 : vector<1x128x256xbf16> to vector<128x256xbf16>
    %cst_26 = arith.constant dense<0.000000e+00> : vector<8x256xf32>
    %39 = tpu.matmul %36, %38, %cst_26 {dimension_numbers = #tpu.dot_dimension_numbers<[1], [0], [0], [1], [0, 0, 1, 1], [], []>} : vector<8x128xbf16>, vector<128x256xbf16>, vector<8x256xf32> -> vector<8x256xf32>
    %40 = arith.addf %34, %39 : vector<8x256xf32>
    %41 = vector.extract_strided_slice %33 {offsets = [8, 0], sizes = [8, 128], strides = [1, 1]} : vector<24x128xf32> to vector<8x128xf32>
    %42 = arith.truncf %41 : vector<8x128xf32> to vector<8x128xbf16>
    %c1_27 = arith.constant 1 : index
    %c0_28 = arith.constant 0 : index
    %c0_29 = arith.constant 0 : index
    %43 = vector.load %arg6[%c1_27, %c0_28, %c0_29] : memref<3x128x256xbf16, #tpu.memory_space<vmem>>, vector<1x128x256xbf16>
    %44 = vector.shape_cast %43 : vector<1x128x256xbf16> to vector<128x256xbf16>
    %cst_30 = arith.constant dense<0.000000e+00> : vector<8x256xf32>
    %45 = tpu.matmul %42, %44, %cst_30 {dimension_numbers = #tpu.dot_dimension_numbers<[1], [0], [0], [1], [0, 0, 1, 1], [], []>} : vector<8x128xbf16>, vector<128x256xbf16>, vector<8x256xf32> -> vector<8x256xf32>
    %46 = arith.addf %40, %45 : vector<8x256xf32>
    %47 = vector.extract_strided_slice %33 {offsets = [16, 0], sizes = [8, 128], strides = [1, 1]} : vector<24x128xf32> to vector<8x128xf32>
    %48 = arith.truncf %47 : vector<8x128xf32> to vector<8x128xbf16>
    %c2_31 = arith.constant 2 : index
    %c0_32 = arith.constant 0 : index
    %c0_33 = arith.constant 0 : index
    %49 = vector.load %arg6[%c2_31, %c0_32, %c0_33] : memref<3x128x256xbf16, #tpu.memory_space<vmem>>, vector<1x128x256xbf16>
    %50 = vector.shape_cast %49 : vector<1x128x256xbf16> to vector<128x256xbf16>
    %cst_34 = arith.constant dense<0.000000e+00> : vector<8x256xf32>
    %51 = tpu.matmul %48, %50, %cst_34 {dimension_numbers = #tpu.dot_dimension_numbers<[1], [0], [0], [1], [0, 0, 1, 1], [], []>} : vector<8x128xbf16>, vector<128x256xbf16>, vector<8x256xf32> -> vector<8x256xf32>
    %52 = arith.addf %46, %51 : vector<8x256xf32>
    %c0_35 = arith.constant 0 : index
    %c0_36 = arith.constant 0 : index
    %53 = vector.load %arg7[%c0_35, %c0_36] : memref<1x256xf32, #tpu.memory_space<vmem>>, vector<1x256xf32>
    %54 = vector.broadcast %53 : vector<1x256xf32> to vector<8x256xf32>
    %55 = arith.addf %52, %54 : vector<8x256xf32>
    %c0_37 = arith.constant 0 : index
    %c0_38 = arith.constant 0 : index
    %56 = vector.load %arg10[%c0_37, %c0_38] : memref<16x8xbf16, #tpu.memory_space<vmem>>, vector<16x8xbf16>
    %57 = arith.truncf %55 : vector<8x256xf32> to vector<8x256xbf16>
    %cst_39 = arith.constant dense<0.000000e+00> : vector<16x256xf32>
    %58 = tpu.matmul %56, %57, %cst_39 {dimension_numbers = #tpu.dot_dimension_numbers<[1], [0], [0], [1], [0, 0, 1, 1], [], []>} : vector<16x8xbf16>, vector<8x256xbf16>, vector<16x256xf32> -> vector<16x256xf32>
    %59 = arith.truncf %58 : vector<16x256xf32> to vector<16x256xbf16>
    %c0_40 = arith.constant 0 : index
    %c0_41 = arith.constant 0 : index
    %60 = vector.load %arg11[%c0_40, %c0_41] : memref<256x512xbf16, #tpu.memory_space<vmem>>, vector<256x512xbf16>
    %cst_42 = arith.constant dense<0.000000e+00> : vector<16x512xf32>
    %61 = tpu.matmul %59, %60, %cst_42 {dimension_numbers = #tpu.dot_dimension_numbers<[1], [0], [0], [1], [0, 0, 1, 1], [], []>} : vector<16x256xbf16>, vector<256x512xbf16>, vector<16x512xf32> -> vector<16x512xf32>
    %c0_43 = arith.constant 0 : index
    %c0_44 = arith.constant 0 : index
    %62 = vector.load %arg13[%c0_43, %c0_44] : memref<16x512xf32, #tpu.memory_space<vmem>>, vector<16x512xf32>
    tpu.vector_store %arg13[%c0_43, %c0_44], %61 {strides = array<i32>} : memref<16x512xf32, #tpu.memory_space<vmem>>, vector<16x512xf32>,
    %63 = arith.truncf %55 : vector<8x256xf32> to vector<8x256xbf16>
    %cst_45 = arith.constant 0.000000e+00 : f32
    %64 = vector.broadcast %cst_45 : f32 to vector<8x64xf32>
    %c0_46 = arith.constant 0 : index
    %c0_47 = arith.constant 0 : index
    %c0_48 = arith.constant 0 : index
    %65 = vector.load %arg8[%c0_46, %c0_47, %c0_48] : memref<3x256x64xbf16, #tpu.memory_space<vmem>>, vector<1x256x64xbf16>
    %66 = vector.shape_cast %65 : vector<1x256x64xbf16> to vector<256x64xbf16>
    %cst_49 = arith.constant dense<0.000000e+00> : vector<8x64xf32>
    %67 = tpu.matmul %63, %66, %cst_49 {dimension_numbers = #tpu.dot_dimension_numbers<[1], [0], [0], [1], [0, 0, 1, 1], [], []>} : vector<8x256xbf16>, vector<256x64xbf16>, vector<8x64xf32> -> vector<8x64xf32>
    %68 = vector.extract_strided_slice %7 {offsets = [0, 0], sizes = [8, 8], strides = [1, 1]} : vector<24x8xbf16> to vector<8x8xbf16>
    %69 = arith.truncf %67 : vector<8x64xf32> to vector<8x64xbf16>
    %cst_50 = arith.constant dense<0.000000e+00> : vector<8x64xf32>
    %70 = tpu.matmul %68, %69, %cst_50 {dimension_numbers = #tpu.dot_dimension_numbers<[1], [0], [0], [1], [0, 0, 1, 1], [], []>} : vector<8x8xbf16>, vector<8x64xbf16>, vector<8x64xf32> -> vector<8x64xf32>
    %71 = arith.addf %64, %70 : vector<8x64xf32>
    %c1_51 = arith.constant 1 : index
    %c0_52 = arith.constant 0 : index
    %c0_53 = arith.constant 0 : index
    %72 = vector.load %arg8[%c1_51, %c0_52, %c0_53] : memref<3x256x64xbf16, #tpu.memory_space<vmem>>, vector<1x256x64xbf16>
    %73 = vector.shape_cast %72 : vector<1x256x64xbf16> to vector<256x64xbf16>
    %cst_54 = arith.constant dense<0.000000e+00> : vector<8x64xf32>
    %74 = tpu.matmul %63, %73, %cst_54 {dimension_numbers = #tpu.dot_dimension_numbers<[1], [0], [0], [1], [0, 0, 1, 1], [], []>} : vector<8x256xbf16>, vector<256x64xbf16>, vector<8x64xf32> -> vector<8x64xf32>
    %75 = vector.extract_strided_slice %7 {offsets = [8, 0], sizes = [8, 8], strides = [1, 1]} : vector<24x8xbf16> to vector<8x8xbf16>
    %76 = arith.truncf %74 : vector<8x64xf32> to vector<8x64xbf16>
    %cst_55 = arith.constant dense<0.000000e+00> : vector<8x64xf32>
    %77 = tpu.matmul %75, %76, %cst_55 {dimension_numbers = #tpu.dot_dimension_numbers<[1], [0], [0], [1], [0, 0, 1, 1], [], []>} : vector<8x8xbf16>, vector<8x64xbf16>, vector<8x64xf32> -> vector<8x64xf32>
    %78 = arith.addf %71, %77 : vector<8x64xf32>
    %c2_56 = arith.constant 2 : index
    %c0_57 = arith.constant 0 : index
    %c0_58 = arith.constant 0 : index
    %79 = vector.load %arg8[%c2_56, %c0_57, %c0_58] : memref<3x256x64xbf16, #tpu.memory_space<vmem>>, vector<1x256x64xbf16>
    %80 = vector.shape_cast %79 : vector<1x256x64xbf16> to vector<256x64xbf16>
    %cst_59 = arith.constant dense<0.000000e+00> : vector<8x64xf32>
    %81 = tpu.matmul %63, %80, %cst_59 {dimension_numbers = #tpu.dot_dimension_numbers<[1], [0], [0], [1], [0, 0, 1, 1], [], []>} : vector<8x256xbf16>, vector<256x64xbf16>, vector<8x64xf32> -> vector<8x64xf32>
    %82 = vector.extract_strided_slice %7 {offsets = [16, 0], sizes = [8, 8], strides = [1, 1]} : vector<24x8xbf16> to vector<8x8xbf16>
    %83 = arith.truncf %81 : vector<8x64xf32> to vector<8x64xbf16>
    %cst_60 = arith.constant dense<0.000000e+00> : vector<8x64xf32>
    %84 = tpu.matmul %82, %83, %cst_60 {dimension_numbers = #tpu.dot_dimension_numbers<[1], [0], [0], [1], [0, 0, 1, 1], [], []>} : vector<8x8xbf16>, vector<8x64xbf16>, vector<8x64xf32> -> vector<8x64xf32>
    %85 = arith.addf %78, %84 : vector<8x64xf32>
    %c0_61 = arith.constant 0 : index
    %c0_62 = arith.constant 0 : index
    %86 = vector.load %arg9[%c0_61, %c0_62] : memref<1x64xf32, #tpu.memory_space<vmem>>, vector<1x64xf32>
    %87 = vector.broadcast %86 : vector<1x64xf32> to vector<8x64xf32>
    %88 = arith.addf %85, %87 : vector<8x64xf32>
    %c0_63 = arith.constant 0 : index
    %c0_64 = arith.constant 0 : index
    %89 = vector.load %arg12[%c0_63, %c0_64] : memref<8x64xf32, #tpu.memory_space<vmem>>, vector<8x64xf32>
    tpu.vector_store %arg12[%c0_63, %c0_64], %88 {strides = array<i32>} : memref<8x64xf32, #tpu.memory_space<vmem>>, vector<8x64xf32>,
    return
  }
}

</mosaic_0001>

<llo_original>
// kernel: tpu_custom_call.1
$region0: #{tpu_custom_call.1}
  #allocation0 [shape = 'u32[]', space=smem, size = 0x4, offset = 0x4, fixed_abs, tag = 'smem constant byte address 0x4 - core index']
  #allocation1 [shape = 'u32[144,128]{1,0:T(1,128)}', space=vmem, size = 0x12000, scoped, tag = 'internal scratch']
  %s0 = inlined_call_operand.vmem [shape: f32[8,16], index: 0, kind: input, shape index: {}]
  %s1 = inlined_call_operand.vmem [shape: bf16[16,64], index: 1, kind: input, shape index: {}]
  %s2 = inlined_call_operand.vmem [shape: f32[1,64], index: 2, kind: input, shape index: {}]
  %s3 = inlined_call_operand.vmem [shape: bf16[24,8], index: 3, kind: input, shape index: {}]
  %s4 = inlined_call_operand.vmem [shape: bf16[3,64,128], index: 4, kind: input, shape index: {}]
  %s5 = inlined_call_operand.vmem [shape: f32[1,128], index: 5, kind: input, shape index: {}]
  %s6 = inlined_call_operand.hbm [shape: bf16[3,128,256], index: 6, kind: input, shape index: {}]
  %s7 = inlined_call_operand.vmem [shape: f32[1,256], index: 7, kind: input, shape index: {}]
  %s8 = inlined_call_operand.vmem [shape: bf16[3,256,64], index: 8, kind: input, shape index: {}]
  %s9 = inlined_call_operand.vmem [shape: f32[1,64], index: 9, kind: input, shape index: {}]
  %s10 = inlined_call_operand.vmem [shape: bf16[16,8], index: 10, kind: input, shape index: {}]
  %s11 = inlined_call_operand.vmem [shape: bf16[256,512], index: 11, kind: input, shape index: {}]
  %s12 = inlined_call_operand.hbm [shape: f32[8,64], index: 12, kind: output, shape index: {0}]
  %s13 = inlined_call_operand.hbm [shape: f32[16,512], index: 13, kind: output, shape index: {1}]
  %14 = xla_tuple %s12, %s13
  %s15 = sld [smem:[#allocation0]]
  $region70: #{tpu_custom_call.1} parent=0
    _
  %s17 = ssub.s32 1, %s15
  %s18 = scalar_select 0, %s17, %s15
  $region1: #{tpu_custom_call.1} parent=0
    #allocation2 [shape = 'u8[196608]{0}', space=vmem, size = 0x30000, scoped, tag = 'input window, operand 6, single buffered']
    #allocation3 [shape = 's32[1]{0}', space=sflag, size = 0x4, scoped, tag = 'scoped memory for tpu_custom_call.1']
    #allocation4 [shape = 's32[1]{0}', space=sflag, size = 0x4, scoped, tag = 'scoped memory for tpu_custom_call.1']
    #allocation5 [shape = 'u8[4096]{0}', space=vmem, size = 0x1000, scoped, tag = 'output window, operand 0, single buffered']
    #allocation6 [shape = 'u8[32768]{0}', space=vmem, size = 0x8000, scoped, tag = 'output window, operand 1, single buffered']
    #allocation7 [shape = 's32[1]{0}', space=sflag, size = 0x4, scoped, tag = 'scoped memory for tpu_custom_call.1']
    %19 = vsyncpa [#allocation3], 0
    %20 = vsyncpa [#allocation4], 0
    %21 = vsyncpa [#allocation7], 0
    // Predicated region
    $region2: #{tpu_custom_call.1} parent=1 // pred_check
      _
    $region3: #{tpu_custom_call.1} parent=1 // pred_check_branch
      %23 = sbr.rel (0) target = $region5
    $region4: #{tpu_custom_call.1} parent=1 // pred_region
      _
    $region5: #{tpu_custom_call.1} parent=1 // pred_fallthru
      _
    // Predicated region
    $region6: #{tpu_custom_call.1} parent=1 // pred_check
      _
    $region7: #{tpu_custom_call.1} parent=1 // pred_check_branch
      %25 = sbr.rel (0) target = $region9
    $region8: #{tpu_custom_call.1} parent=1 // pred_region
      _
    $region9: #{tpu_custom_call.1} parent=1 // pred_fallthru
      _
    // Predicated region
    $region10: #{tpu_custom_call.1} parent=1 // pred_check
      _
    $region11: #{tpu_custom_call.1} parent=1 // pred_check_branch
      %27 = sbr.rel (0) target = $region13
    $region12: #{tpu_custom_call.1} parent=1 // pred_region
      _
    $region13: #{tpu_custom_call.1} parent=1 // pred_fallthru
      _
    // Predicated region
    $region14: #{tpu_custom_call.1} parent=1 // pred_check
      _
    $region15: #{tpu_custom_call.1} parent=1 // pred_check_branch
      %29 = sbr.rel (0) target = $region17
    $region16: #{tpu_custom_call.1} parent=1 // pred_region
      _
    $region17: #{tpu_custom_call.1} parent=1 // pred_fallthru
      _
    // Predicated region
    $region18: #{tpu_custom_call.1} parent=1 // pred_check
      _
    $region19: #{tpu_custom_call.1} parent=1 // pred_check_branch
      %31 = sbr.rel (0) target = $region21
    $region20: #{tpu_custom_call.1} parent=1 // pred_region
      _
    $region21: #{tpu_custom_call.1} parent=1 // pred_fallthru
      _
    // Predicated region
    $region22: #{tpu_custom_call.1} parent=1 // pred_check
      _
    $region23: #{tpu_custom_call.1} parent=1 // pred_check_branch
      %33 = sbr.rel (0) target = $region25
    $region24: #{tpu_custom_call.1} parent=1 // pred_region
      _
    $region25: #{tpu_custom_call.1} parent=1 // pred_fallthru
      _
    // Predicated region
    $region26: #{tpu_custom_call.1} parent=1 // pred_check
      _
    $region27: #{tpu_custom_call.1} parent=1 // pred_check_branch
      %35 = sbr.rel (0) target = $region29
    $region28: #{tpu_custom_call.1} parent=1 // pred_region
      %s37 = ssub.s32 6144, 6144
      %38 = vsyncadd [#allocation3], %s37
      %s39 = sshll.u32 [#allocation2], 4
      %s40 = int_to_ptr.vmem [resolvable:$true] %s39
      %45 = dma.hbm_to_vmem [thread:$0]  %s6, 6144, %s40, [#allocation3], 128, 128, 8
    $region29: #{tpu_custom_call.1} parent=1 // pred_fallthru
      _
    // Predicated region
    $region30: #{tpu_custom_call.1} parent=1 // pred_check
      _
    $region31: #{tpu_custom_call.1} parent=1 // pred_check_branch
      %47 = sbr.rel (0) target = $region33
    $region32: #{tpu_custom_call.1} parent=1 // pred_region
      _
    $region33: #{tpu_custom_call.1} parent=1 // pred_fallthru
      _
    // Predicated region
    $region34: #{tpu_custom_call.1} parent=1 // pred_check
      _
    $region35: #{tpu_custom_call.1} parent=1 // pred_check_branch
      %49 = sbr.rel (0) target = $region37
    $region36: #{tpu_custom_call.1} parent=1 // pred_region
      _
    $region37: #{tpu_custom_call.1} parent=1 // pred_fallthru
      _
    // Predicated region
    $region38: #{tpu_custom_call.1} parent=1 // pred_check
      _
    $region39: #{tpu_custom_call.1} parent=1 // pred_check_branch
      %51 = sbr.rel (0) target = $region41
    $region40: #{tpu_custom_call.1} parent=1 // pred_region
      _
    $region41: #{tpu_custom_call.1} parent=1 // pred_fallthru
      _
    // Predicated region
    $region42: #{tpu_custom_call.1} parent=1 // pred_check
      _
    $region43: #{tpu_custom_call.1} parent=1 // pred_check_branch
      %53 = sbr.rel (0) target = $region45
    $region44: #{tpu_custom_call.1} parent=1 // pred_region
      _
    $region45: #{tpu_custom_call.1} parent=1 // pred_fallthru
      _
    // Predicated region
    $region46: #{tpu_custom_call.1} parent=1 // pred_check
      _
    $region47: #{tpu_custom_call.1} parent=1 // pred_check_branch
      %55 = sbr.rel (0) target = $region49
    $region48: #{tpu_custom_call.1} parent=1 // pred_region
      _
    $region49: #{tpu_custom_call.1} parent=1 // pred_fallthru
      _
    // Predicated region
    $region50: #{tpu_custom_call.1} parent=1 // pred_check
      _
    $region51: #{tpu_custom_call.1} parent=1 // pred_check_branch
      %57 = sbr.rel (0) target = $region53
    $region52: #{tpu_custom_call.1} parent=1 // pred_region
      %58 = dma.done [#allocation3], 6144
    $region53: #{tpu_custom_call.1} parent=1 // pred_fallthru
      _
    %v60 = vld [vmem:[%s0] sm:$0xff]
    %v61 = vpack.c.bf16 %v60, %v60
    %v62 = vld [vmem:[%s1] sm:$0xf]
    %v63 = vld [vmem:[%s1 + $0x4] sm:$0xf]
    %v64 = vld [vmem:[%s2] sm:$0x1]
    %v66 = vlaneseq
    %v67 = vshrl.u32 %v66, 7
    %v68 = vsub.s32 0, %v67
    %v69 = vrot.slane %v64, %v68
    %v73 = vunpack.c.l.b16 %v62
    %v74 = vunpack.c.l.b16 %v63
    %v75 = vpack.c.b16 %v74, %v73
    %vm77 = vcmask 130048
    %v79 = vsel %vm77, %v61, 0
    %81 = vmatprep.subr.bf16.mxu0 0
    %82 = vmatpush1.bf16.msra.mxu0 %v75
    %83 = vmatprep.subr.bf16.mxu0 0
    %84 = vmatpush1.bf16.msra.mxu0 0
    %85 = vmatprep.subr.bf16.mxu0 0
    %86 = vmatpush1.bf16.msra.mxu0 0
    %87 = vmatprep.subr.bf16.mxu0 0
    %88 = vmatpush1.bf16.msra.mxu0 0
    %89 = vmatprep.subr.bf16.mxu0 0
    %90 = vmatpush1.bf16.msra.mxu0 0
    %91 = vmatprep.subr.bf16.mxu0 0
    %92 = vmatpush1.bf16.msra.mxu0 0
    %93 = vmatprep.subr.bf16.mxu0 0
    %94 = vmatpush1.bf16.msra.mxu0 0
    %95 = vmatprep.subr.bf16.mxu0 0
    %96 = vmatpush1.bf16.msra.mxu0 0
    %97 = vmatprep.subr.bf16.mxu0 0
    %98 = vmatpush1.bf16.msra.mxu0 0
    %99 = vmatprep.subr.bf16.mxu0 0
    %100 = vmatpush1.bf16.msra.mxu0 0
    %101 = vmatprep.subr.bf16.mxu0 0
    %102 = vmatpush1.bf16.msra.mxu0 0
    %103 = vmatprep.subr.bf16.mxu0 0
    %104 = vmatpush1.bf16.msra.mxu0 0
    %105 = vmatprep.subr.bf16.mxu0 0
    %106 = vmatpush1.bf16.msra.mxu0 0
    %107 = vmatprep.subr.bf16.mxu0 0
    %108 = vmatpush1.bf16.msra.mxu0 0
    %109 = vmatprep.subr.bf16.mxu0 0
    %110 = vmatpush1.bf16.msra.mxu0 0
    %111 = vmatprep.subr.bf16.mxu0 0
    %112 = vmatpush1.bf16.msra.mxu0 0
    %113 = vmatprep.mubr.bf16.mxu0 0
    %114 = vmatmul.mubr.bf16.gmra.mrb[0].mxu0 %v79
    %v115 = vpop.f32.mrb[0].mxu0
    %v116 = vadd.f32 %v69, %v115
    %v117 = vpop.f32.mrb[0].mxu0
    %v118 = vpop.f32.mrb[0].mxu0
    %v119 = vpop.f32.mrb[0].mxu0
    %120 = vdwg.mxu0
    %v121 = vld [vmem:[%s3] sm:$0xf]
    %v122 = vld [vmem:[%s3 + $0x4] sm:$0xf]
    %v123 = vld [vmem:[%s3 + $0x8] sm:$0xf]
    %v124 = vpack.c.bf16 %v116, %v116
    %v128 = vunpack.c.l.b16 %v121
    %v129 = vunpack.c.l.b16 %v122
    %v130 = vunpack.c.l.b16 %v123
    %v131 = vpack.c.b16 %v129, %v128
    %v132 = vpack.c.b16 %v130, %v130
    %vm133 = vcmask 64512
    %v135 = vsel %vm133, %v131, 0
    %v138 = vsel %vm133, %v132, 0
    %vm140 = vcmask 1043456
    %v142 = vsel %vm140, %v124, 0
    %144 = vmatprep.subr.bf16.mxu0 0
    %145 = vmatpush1.bf16.msra.mxu0 %v142
    %146 = vmatprep.subr.bf16.mxu0 0
    %147 = vmatpush1.bf16.msra.mxu0 0
    %148 = vmatprep.subr.bf16.mxu0 0
    %149 = vmatpush1.bf16.msra.mxu0 0
    %150 = vmatprep.subr.bf16.mxu0 0
    %151 = vmatpush1.bf16.msra.mxu0 0
    %152 = vmatprep.subr.bf16.mxu0 0
    %153 = vmatpush1.bf16.msra.mxu0 0
    %154 = vmatprep.subr.bf16.mxu0 0
    %155 = vmatpush1.bf16.msra.mxu0 0
    %156 = vmatprep.subr.bf16.mxu0 0
    %157 = vmatpush1.bf16.msra.mxu0 0
    %158 = vmatprep.subr.bf16.mxu0 0
    %159 = vmatpush1.bf16.msra.mxu0 0
    %160 = vmatprep.subr.bf16.mxu0 0
    %161 = vmatpush1.bf16.msra.mxu0 0
    %162 = vmatprep.subr.bf16.mxu0 0
    %163 = vmatpush1.bf16.msra.mxu0 0
    %164 = vmatprep.subr.bf16.mxu0 0
    %165 = vmatpush1.bf16.msra.mxu0 0
    %166 = vmatprep.subr.bf16.mxu0 0
    %167 = vmatpush1.bf16.msra.mxu0 0
    %168 = vmatprep.subr.bf16.mxu0 0
    %169 = vmatpush1.bf16.msra.mxu0 0
    %170 = vmatprep.subr.bf16.mxu0 0
    %171 = vmatpush1.bf16.msra.mxu0 0
    %172 = vmatprep.subr.bf16.mxu0 0
    %173 = vmatpush1.bf16.msra.mxu0 0
    %174 = vmatprep.subr.bf16.mxu0 0
    %175 = vmatpush1.bf16.msra.mxu0 0
    %176 = vmatprep.mubr.bf16.mxu0 0
    %177 = vmatmul.mubr.bf16.gmra.mrb[0].mxu0 %v135
    %v178 = vpop.f32.mrb[0].mxu0
    %v179 = vadd.f32 0.0, %v178
    %v180 = vpop.f32.mrb[0].mxu0
    %v181 = vpop.f32.mrb[0].mxu0
    %v182 = vadd.f32 0.0, %v181
    %v183 = vpop.f32.mrb[0].mxu0
    %184 = vmatprep.mubr.bf16.mxu0 0
    %185 = vmatmul.mubr.bf16.gmra.mrb[0].mxu0 %v138
    %v186 = vpop.f32.mrb[0].mxu0
    %v187 = vadd.f32 0.0, %v186
    %v188 = vpop.f32.mrb[0].mxu0
    %v189 = vpop.f32.mrb[0].mxu0
    %v190 = vpop.f32.mrb[0].mxu0
    %191 = vdwg.mxu0
    %v192 = vpack.c.bf16 %v179, %v179
    %v193 = vld [vmem:[%s4] sm:$0xf]
    %v194 = vld [vmem:[%s4 + $0x4] sm:$0xf]
    %v195 = vld [vmem:[%s4 + $0x8] sm:$0xf]
    %v196 = vld [vmem:[%s4 + $0xc] sm:$0xf]
    %v197 = vld [vmem:[%s4 + $0x10] sm:$0xf]
    %v198 = vld [vmem:[%s4 + $0x14] sm:$0xf]
    %v199 = vld [vmem:[%s4 + $0x18] sm:$0xf]
    %v200 = vld [vmem:[%s4 + $0x1c] sm:$0xf]
    %v201 = vpack.c.bf16 %v182, %v182
    %s202 = scalar_lea.vmem %s4, 32
    %v203 = vld [vmem:[%s202] sm:$0xf]
    %v204 = vld [vmem:[%s202 + $0x4] sm:$0xf]
    %v205 = vld [vmem:[%s202 + $0x8] sm:$0xf]
    %v206 = vld [vmem:[%s202 + $0xc] sm:$0xf]
    %v207 = vld [vmem:[%s202 + $0x10] sm:$0xf]
    %v208 = vld [vmem:[%s202 + $0x14] sm:$0xf]
    %v209 = vld [vmem:[%s202 + $0x18] sm:$0xf]
    %v210 = vld [vmem:[%s202 + $0x1c] sm:$0xf]
    %v219 = vunpack.c.l.b16 %v203
    %v220 = vunpack.c.l.b16 %v204
    %v221 = vunpack.c.l.b16 %v205
    %v222 = vunpack.c.l.b16 %v206
    %v223 = vunpack.c.l.b16 %v207
    %v224 = vunpack.c.l.b16 %v208
    %v225 = vunpack.c.l.b16 %v209
    %v226 = vunpack.c.l.b16 %v210
    %v227 = vpack.c.b16 %v220, %v219
    %v228 = vpack.c.b16 %v222, %v221
    %v229 = vpack.c.b16 %v224, %v223
    %v230 = vpack.c.b16 %v226, %v225
    %vm235 = vcmask 523264
    %v237 = vsel %vm235, %v201, 0
    %239 = vmatprep.subr.bf16.mxu0 0
    %240 = vmatpush1.bf16.msra.mxu0 %v227
    %241 = vmatprep.subr.bf16.mxu0 0
    %242 = vmatpush1.bf16.msra.mxu0 %v228
    %243 = vmatprep.subr.bf16.mxu0 0
    %244 = vmatpush1.bf16.msra.mxu0 %v229
    %245 = vmatprep.subr.bf16.mxu0 0
    %246 = vmatpush1.bf16.msra.mxu0 %v230
    %247 = vmatprep.subr.bf16.mxu0 0
    %248 = vmatpush1.bf16.msra.mxu0 0
    %249 = vmatprep.subr.bf16.mxu0 0
    %250 = vmatpush1.bf16.msra.mxu0 0
    %251 = vmatprep.subr.bf16.mxu0 0
    %252 = vmatpush1.bf16.msra.mxu0 0
    %253 = vmatprep.subr.bf16.mxu0 0
    %254 = vmatpush1.bf16.msra.mxu0 0
    %255 = vmatprep.subr.bf16.mxu0 0
    %256 = vmatpush1.bf16.msra.mxu0 0
    %257 = vmatprep.subr.bf16.mxu0 0
    %258 = vmatpush1.bf16.msra.mxu0 0
    %259 = vmatprep.subr.bf16.mxu0 0
    %260 = vmatpush1.bf16.msra.mxu0 0
    %261 = vmatprep.subr.bf16.mxu0 0
    %262 = vmatpush1.bf16.msra.mxu0 0
    %263 = vmatprep.subr.bf16.mxu0 0
    %264 = vmatpush1.bf16.msra.mxu0 0
    %265 = vmatprep.subr.bf16.mxu0 0
    %266 = vmatpush1.bf16.msra.mxu0 0
    %267 = vmatprep.subr.bf16.mxu0 0
    %268 = vmatpush1.bf16.msra.mxu0 0
    %269 = vmatprep.subr.bf16.mxu0 0
    %270 = vmatpush1.bf16.msra.mxu0 0
    %271 = vmatprep.mubr.bf16.mxu0 0
    %272 = vmatmul.mubr.bf16.gmra.mrb[0].mxu0 %v237
    %v273 = vpop.f32.mrb[0].mxu0
    %v274 = vadd.f32 0.0, %v273
    %v275 = vpop.f32.mrb[0].mxu0
    %v276 = vpop.f32.mrb[0].mxu0
    %v277 = vpop.f32.mrb[0].mxu0
    %278 = vdwg.mxu0
    %v287 = vunpack.c.l.b16 %v193
    %v288 = vunpack.c.l.b16 %v194
    %v289 = vunpack.c.l.b16 %v195
    %v290 = vunpack.c.l.b16 %v196
    %v291 = vunpack.c.l.b16 %v197
    %v292 = vunpack.c.l.b16 %v198
    %v293 = vunpack.c.l.b16 %v199
    %v294 = vunpack.c.l.b16 %v200
    %v295 = vpack.c.b16 %v288, %v287
    %v296 = vpack.c.b16 %v290, %v289
    %v297 = vpack.c.b16 %v292, %v291
    %v298 = vpack.c.b16 %v294, %v293
    %v304 = vsel %vm235, %v192, 0
    %306 = vmatprep.subr.bf16.mxu0 0
    %307 = vmatpush1.bf16.msra.mxu0 %v295
    %308 = vmatprep.subr.bf16.mxu0 0
    %309 = vmatpush1.bf16.msra.mxu0 %v296
    %310 = vmatprep.subr.bf16.mxu0 0
    %311 = vmatpush1.bf16.msra.mxu0 %v297
    %312 = vmatprep.subr.bf16.mxu0 0
    %313 = vmatpush1.bf16.msra.mxu0 %v298
    %314 = vmatprep.subr.bf16.mxu0 0
    %315 = vmatpush1.bf16.msra.mxu0 0
    %316 = vmatprep.subr.bf16.mxu0 0
    %317 = vmatpush1.bf16.msra.mxu0 0
    %318 = vmatprep.subr.bf16.mxu0 0
    %319 = vmatpush1.bf16.msra.mxu0 0
    %320 = vmatprep.subr.bf16.mxu0 0
    %321 = vmatpush1.bf16.msra.mxu0 0
    %322 = vmatprep.subr.bf16.mxu0 0
    %323 = vmatpush1.bf16.msra.mxu0 0
    %324 = vmatprep.subr.bf16.mxu0 0
    %325 = vmatpush1.bf16.msra.mxu0 0
    %326 = vmatprep.subr.bf16.mxu0 0
    %327 = vmatpush1.bf16.msra.mxu0 0
    %328 = vmatprep.subr.bf16.mxu0 0
    %329 = vmatpush1.bf16.msra.mxu0 0
    %330 = vmatprep.subr.bf16.mxu0 0
    %331 = vmatpush1.bf16.msra.mxu0 0
    %332 = vmatprep.subr.bf16.mxu0 0
    %333 = vmatpush1.bf16.msra.mxu0 0
    %334 = vmatprep.subr.bf16.mxu0 0
    %335 = vmatpush1.bf16.msra.mxu0 0
    %336 = vmatprep.subr.bf16.mxu0 0
    %337 = vmatpush1.bf16.msra.mxu0 0
    %338 = vmatprep.mubr.bf16.mxu0 0
    %339 = vmatmul.mubr.bf16.gmra.mrb[0].mxu0 %v304
    %v340 = vpop.f32.mrb[0].mxu0
    %v341 = vadd.f32 %v274, %v340
    %v342 = vpop.f32.mrb[0].mxu0
    %v343 = vpop.f32.mrb[0].mxu0
    %v344 = vpop.f32.mrb[0].mxu0
    %345 = vdwg.mxu0
    %v346 = vpack.c.bf16 %v187, %v187
    %s347 = scalar_lea.vmem %s4, 64
    %v348 = vld [vmem:[%s347] sm:$0xf]
    %v349 = vld [vmem:[%s347 + $0x4] sm:$0xf]
    %v350 = vld [vmem:[%s347 + $0x8] sm:$0xf]
    %v351 = vld [vmem:[%s347 + $0xc] sm:$0xf]
    %v352 = vld [vmem:[%s347 + $0x10] sm:$0xf]
    %v353 = vld [vmem:[%s347 + $0x14] sm:$0xf]
    %v354 = vld [vmem:[%s347 + $0x18] sm:$0xf]
    %v355 = vld [vmem:[%s347 + $0x1c] sm:$0xf]
    %v364 = vunpack.c.l.b16 %v348
    %v365 = vunpack.c.l.b16 %v349
    %v366 = vunpack.c.l.b16 %v350
    %v367 = vunpack.c.l.b16 %v351
    %v368 = vunpack.c.l.b16 %v352
    %v369 = vunpack.c.l.b16 %v353
    %v370 = vunpack.c.l.b16 %v354
    %v371 = vunpack.c.l.b16 %v355
    %v372 = vpack.c.b16 %v365, %v364
    %v373 = vpack.c.b16 %v367, %v366
    %v374 = vpack.c.b16 %v369, %v368
    %v375 = vpack.c.b16 %v371, %v370
    %v381 = vsel %vm235, %v346, 0
    %383 = vmatprep.subr.bf16.mxu0 0
    %384 = vmatpush1.bf16.msra.mxu0 %v372
    %385 = vmatprep.subr.bf16.mxu0 0
    %386 = vmatpush1.bf16.msra.mxu0 %v373
    %387 = vmatprep.subr.bf16.mxu0 0
    %388 = vmatpush1.bf16.msra.mxu0 %v374
    %389 = vmatprep.subr.bf16.mxu0 0
    %390 = vmatpush1.bf16.msra.mxu0 %v375
    %391 = vmatprep.subr.bf16.mxu0 0
    %392 = vmatpush1.bf16.msra.mxu0 0
    %393 = vmatprep.subr.bf16.mxu0 0
    %394 = vmatpush1.bf16.msra.mxu0 0
    %395 = vmatprep.subr.bf16.mxu0 0
    %396 = vmatpush1.bf16.msra.mxu0 0
    %397 = vmatprep.subr.bf16.mxu0 0
    %398 = vmatpush1.bf16.msra.mxu0 0
    %399 = vmatprep.subr.bf16.mxu0 0
    %400 = vmatpush1.bf16.msra.mxu0 0
    %401 = vmatprep.subr.bf16.mxu0 0
    %402 = vmatpush1.bf16.msra.mxu0 0
    %403 = vmatprep.subr.bf16.mxu0 0
    %404 = vmatpush1.bf16.msra.mxu0 0
    %405 = vmatprep.subr.bf16.mxu0 0
    %406 = vmatpush1.bf16.msra.mxu0 0
    %407 = vmatprep.subr.bf16.mxu0 0
    %408 = vmatpush1.bf16.msra.mxu0 0
    %409 = vmatprep.subr.bf16.mxu0 0
    %410 = vmatpush1.bf16.msra.mxu0 0
    %411 = vmatprep.subr.bf16.mxu0 0
    %412 = vmatpush1.bf16.msra.mxu0 0
    %413 = vmatprep.subr.bf16.mxu0 0
    %414 = vmatpush1.bf16.msra.mxu0 0
    %415 = vmatprep.mubr.bf16.mxu0 0
    %416 = vmatmul.mubr.bf16.gmra.mrb[0].mxu0 %v381
    %v417 = vpop.f32.mrb[0].mxu0
    %v418 = vadd.f32 0.0, %v417
    %v419 = vpop.f32.mrb[0].mxu0
    %v420 = vpop.f32.mrb[0].mxu0
    %v421 = vpop.f32.mrb[0].mxu0
    %422 = vdwg.mxu0
    %v423 = vadd.f32 %v341, %v418
    %v424 = vld [vmem:[%s5] sm:$0x1]
    %v426 = vlaneseq
    %v427 = vshrl.u32 %v426, 7
    %v428 = vsub.s32 0, %v427
    %v429 = vrot.slane %v424, %v428
    %v431 = vadd.f32 %v423, %v429
    %v432 = vpack.c.bf16 %v431, %v431
    %v434 = vsel %vm140, %v432, 0
    %436 = vmatprep.subr.bf16.mxu0 0
    %437 = vmatpush1.bf16.msra.mxu0 %v434
    %438 = vmatprep.subr.bf16.mxu0 0
    %439 = vmatpush1.bf16.msra.mxu0 0
    %440 = vmatprep.subr.bf16.mxu0 0
    %441 = vmatpush1.bf16.msra.mxu0 0
    %442 = vmatprep.subr.bf16.mxu0 0
    %443 = vmatpush1.bf16.msra.mxu0 0
    %444 = vmatprep.subr.bf16.mxu0 0
    %445 = vmatpush1.bf16.msra.mxu0 0
    %446 = vmatprep.subr.bf16.mxu0 0
    %447 = vmatpush1.bf16.msra.mxu0 0
    %448 = vmatprep.subr.bf16.mxu0 0
    %449 = vmatpush1.bf16.msra.mxu0 0
    %450 = vmatprep.subr.bf16.mxu0 0
    %451 = vmatpush1.bf16.msra.mxu0 0
    %452 = vmatprep.subr.bf16.mxu0 0
    %453 = vmatpush1.bf16.msra.mxu0 0
    %454 = vmatprep.subr.bf16.mxu0 0
    %455 = vmatpush1.bf16.msra.mxu0 0
    %456 = vmatprep.subr.bf16.mxu0 0
    %457 = vmatpush1.bf16.msra.mxu0 0
    %458 = vmatprep.subr.bf16.mxu0 0
    %459 = vmatpush1.bf16.msra.mxu0 0
    %460 = vmatprep.subr.bf16.mxu0 0
    %461 = vmatpush1.bf16.msra.mxu0 0
    %462 = vmatprep.subr.bf16.mxu0 0
    %463 = vmatpush1.bf16.msra.mxu0 0
    %464 = vmatprep.subr.bf16.mxu0 0
    %465 = vmatpush1.bf16.msra.mxu0 0
    %466 = vmatprep.subr.bf16.mxu0 0
    %467 = vmatpush1.bf16.msra.mxu0 0
    %468 = vmatprep.mubr.bf16.mxu0 0
    %469 = vmatmul.mubr.bf16.gmra.mrb[0].mxu0 %v135
    %v470 = vpop.f32.mrb[0].mxu0
    %v471 = vadd.f32 0.0, %v470
    %v472 = vpop.f32.mrb[0].mxu0
    %v473 = vpop.f32.mrb[0].mxu0
    %v474 = vadd.f32 0.0, %v473
    %v475 = vpop.f32.mrb[0].mxu0
    %476 = vmatprep.mubr.bf16.mxu0 0
    %477 = vmatmul.mubr.bf16.gmra.mrb[0].mxu0 %v138
    %v478 = vpop.f32.mrb[0].mxu0
    %v479 = vadd.f32 0.0, %v478
    %v480 = vpop.f32.mrb[0].mxu0
    %v481 = vpop.f32.mrb[0].mxu0
    %v482 = vpop.f32.mrb[0].mxu0
    %483 = vdwg.mxu0
    %v484 = vpack.c.bf16 %v471, %v471
    %v485 = vld [vmem:[#allocation2] sm:$0xff]
    %v486 = vld [vmem:[#allocation2 + $0x8] sm:$0xff]
    %v487 = vld [vmem:[#allocation2 + $0x10] sm:$0xff]
    %v488 = vld [vmem:[#allocation2 + $0x18] sm:$0xff]
    %v489 = vld [vmem:[#allocation2 + $0x20] sm:$0xff]
    %v490 = vld [vmem:[#allocation2 + $0x28] sm:$0xff]
    %v491 = vld [vmem:[#allocation2 + $0x30] sm:$0xff]
    %v492 = vld [vmem:[#allocation2 + $0x38] sm:$0xff]
    %v493 = vld [vmem:[#allocation2 + $0x40] sm:$0xff]
    %v494 = vld [vmem:[#allocation2 + $0x48] sm:$0xff]
    %v495 = vld [vmem:[#allocation2 + $0x50] sm:$0xff]
    %v496 = vld [vmem:[#allocation2 + $0x58] sm:$0xff]
    %v497 = vld [vmem:[#allocation2 + $0x60] sm:$0xff]
    %v498 = vld [vmem:[#allocation2 + $0x68] sm:$0xff]
    %v499 = vld [vmem:[#allocation2 + $0x70] sm:$0xff]
    %v500 = vld [vmem:[#allocation2 + $0x78] sm:$0xff]
    %v501 = vpack.c.bf16 %v474, %v474
    %s502 = scalar_lea.vmem [#allocation2], 128
    %v503 = vld [vmem:[%s502] sm:$0xff]
    %v504 = vld [vmem:[%s502 + $0x8] sm:$0xff]
    %v505 = vld [vmem:[%s502 + $0x10] sm:$0xff]
    %v506 = vld [vmem:[%s502 + $0x18] sm:$0xff]
    %v507 = vld [vmem:[%s502 + $0x20] sm:$0xff]
    %v508 = vld [vmem:[%s502 + $0x28] sm:$0xff]
    %v509 = vld [vmem:[%s502 + $0x30] sm:$0xff]
    %v510 = vld [vmem:[%s502 + $0x38] sm:$0xff]
    %v511 = vld [vmem:[%s502 + $0x40] sm:$0xff]
    %v512 = vld [vmem:[%s502 + $0x48] sm:$0xff]
    %v513 = vld [vmem:[%s502 + $0x50] sm:$0xff]
    %v514 = vld [vmem:[%s502 + $0x58] sm:$0xff]
    %v515 = vld [vmem:[%s502 + $0x60] sm:$0xff]
    %v516 = vld [vmem:[%s502 + $0x68] sm:$0xff]
    %v517 = vld [vmem:[%s502 + $0x70] sm:$0xff]
    %v518 = vld [vmem:[%s502 + $0x78] sm:$0xff]
    %v535 = vunpack.c.l.b16 %v503
    %v536 = vunpack.c.h.b16 %v503
    %v537 = vunpack.c.l.b16 %v504
    %v538 = vunpack.c.h.b16 %v504
    %v539 = vunpack.c.l.b16 %v505
    %v540 = vunpack.c.h.b16 %v505
    %v541 = vunpack.c.l.b16 %v506
    %v542 = vunpack.c.h.b16 %v506
    %v543 = vunpack.c.l.b16 %v507
    %v544 = vunpack.c.h.b16 %v507
    %v545 = vunpack.c.l.b16 %v508
    %v546 = vunpack.c.h.b16 %v508
    %v547 = vunpack.c.l.b16 %v509
    %v548 = vunpack.c.h.b16 %v509
    %v549 = vunpack.c.l.b16 %v510
    %v550 = vunpack.c.h.b16 %v510
    %v551 = vunpack.c.l.b16 %v511
    %v552 = vunpack.c.h.b16 %v511
    %v553 = vunpack.c.l.b16 %v512
    %v554 = vunpack.c.h.b16 %v512
    %v555 = vunpack.c.l.b16 %v513
    %v556 = vunpack.c.h.b16 %v513
    %v557 = vunpack.c.l.b16 %v514
    %v558 = vunpack.c.h.b16 %v514
    %v559 = vunpack.c.l.b16 %v515
    %v560 = vunpack.c.h.b16 %v515
    %v561 = vunpack.c.l.b16 %v516
    %v562 = vunpack.c.h.b16 %v516
    %v563 = vunpack.c.l.b16 %v517
    %v564 = vunpack.c.h.b16 %v517
    %v565 = vunpack.c.l.b16 %v518
    %v566 = vunpack.c.h.b16 %v518
    %v567 = vpack.c.b16 %v537, %v535
    %v568 = vpack.c.b16 %v538, %v536
    %v569 = vpack.c.b16 %v541, %v539
    %v570 = vpack.c.b16 %v542, %v540
    %v571 = vpack.c.b16 %v545, %v543
    %v572 = vpack.c.b16 %v546, %v544
    %v573 = vpack.c.b16 %v549, %v547
    %v574 = vpack.c.b16 %v550, %v548
    %v575 = vpack.c.b16 %v553, %v551
    %v576 = vpack.c.b16 %v554, %v552
    %v577 = vpack.c.b16 %v557, %v555
    %v578 = vpack.c.b16 %v558, %v556
    %v579 = vpack.c.b16 %v561, %v559
    %v580 = vpack.c.b16 %v562, %v560
    %v581 = vpack.c.b16 %v565, %v563
    %v582 = vpack.c.b16 %v566, %v564
    %599 = vmatprep.subr.bf16.mxu0 %v568
    %600 = vmatpush1.bf16.msra.mxu0 %v567
    %601 = vmatprep.subr.bf16.mxu0 %v570
    %602 = vmatpush1.bf16.msra.mxu0 %v569
    %603 = vmatprep.subr.bf16.mxu0 %v572
    %604 = vmatpush1.bf16.msra.mxu0 %v571
    %605 = vmatprep.subr.bf16.mxu0 %v574
    %606 = vmatpush1.bf16.msra.mxu0 %v573
    %607 = vmatprep.subr.bf16.mxu0 %v576
    %608 = vmatpush1.bf16.msra.mxu0 %v575
    %609 = vmatprep.subr.bf16.mxu0 %v578
    %610 = vmatpush1.bf16.msra.mxu0 %v577
    %611 = vmatprep.subr.bf16.mxu0 %v580
    %612 = vmatpush1.bf16.msra.mxu0 %v579
    %613 = vmatprep.subr.bf16.mxu0 %v582
    %614 = vmatpush1.bf16.msra.mxu0 %v581
    %615 = vmatprep.subr.bf16.mxu0 0
    %616 = vmatpush1.bf16.msra.mxu0 0
    %617 = vmatprep.subr.bf16.mxu0 0
    %618 = vmatpush1.bf16.msra.mxu0 0
    %619 = vmatprep.subr.bf16.mxu0 0
    %620 = vmatpush1.bf16.msra.mxu0 0
    %621 = vmatprep.subr.bf16.mxu0 0
    %622 = vmatpush1.bf16.msra.mxu0 0
    %623 = vmatprep.subr.bf16.mxu0 0
    %624 = vmatpush1.bf16.msra.mxu0 0
    %625 = vmatprep.subr.bf16.mxu0 0
    %626 = vmatpush1.bf16.msra.mxu0 0
    %627 = vmatprep.subr.bf16.mxu0 0
    %628 = vmatpush1.bf16.msra.mxu0 0
    %629 = vmatprep.subr.bf16.mxu0 0
    %630 = vmatpush1.bf16.msra.mxu0 0
    %631 = vmatprep.mubr.bf16.mxu0 0
    %632 = vmatmul.mubr.bf16.gmra.mrb[0].mxu0 %v501
    %v633 = vpop.f32.mrb[0].mxu0
    %v634 = vadd.f32 0.0, %v633
    %v635 = vpop.f32.mrb[0].mxu0
    %v636 = vadd.f32 0.0, %v635
    %v637 = vpop.f32.mrb[0].mxu0
    %v638 = vpop.f32.mrb[0].mxu0
    %639 = vdwg.mxu0
    %v656 = vunpack.c.l.b16 %v485
    %v657 = vunpack.c.h.b16 %v485
    %v658 = vunpack.c.l.b16 %v486
    %v659 = vunpack.c.h.b16 %v486
    %v660 = vunpack.c.l.b16 %v487
    %v661 = vunpack.c.h.b16 %v487
    %v662 = vunpack.c.l.b16 %v488
    %v663 = vunpack.c.h.b16 %v488
    %v664 = vunpack.c.l.b16 %v489
    %v665 = vunpack.c.h.b16 %v489
    %v666 = vunpack.c.l.b16 %v490
    %v667 = vunpack.c.h.b16 %v490
    %v668 = vunpack.c.l.b16 %v491
    %v669 = vunpack.c.h.b16 %v491
    %v670 = vunpack.c.l.b16 %v492
    %v671 = vunpack.c.h.b16 %v492
    %v672 = vunpack.c.l.b16 %v493
    %v673 = vunpack.c.h.b16 %v493
    %v674 = vunpack.c.l.b16 %v494
    %v675 = vunpack.c.h.b16 %v494
    %v676 = vunpack.c.l.b16 %v495
    %v677 = vunpack.c.h.b16 %v495
    %v678 = vunpack.c.l.b16 %v496
    %v679 = vunpack.c.h.b16 %v496
    %v680 = vunpack.c.l.b16 %v497
    %v681 = vunpack.c.h.b16 %v497
    %v682 = vunpack.c.l.b16 %v498
    %v683 = vunpack.c.h.b16 %v498
    %v684 = vunpack.c.l.b16 %v499
    %v685 = vunpack.c.h.b16 %v499
    %v686 = vunpack.c.l.b16 %v500
    %v687 = vunpack.c.h.b16 %v500
    %v688 = vpack.c.b16 %v658, %v656
    %v689 = vpack.c.b16 %v659, %v657
    %v690 = vpack.c.b16 %v662, %v660
    %v691 = vpack.c.b16 %v663, %v661
    %v692 = vpack.c.b16 %v666, %v664
    %v693 = vpack.c.b16 %v667, %v665
    %v694 = vpack.c.b16 %v670, %v668
    %v695 = vpack.c.b16 %v671, %v669
    %v696 = vpack.c.b16 %v674, %v672
    %v697 = vpack.c.b16 %v675, %v673
    %v698 = vpack.c.b16 %v678, %v676
    %v699 = vpack.c.b16 %v679, %v677
    %v700 = vpack.c.b16 %v682, %v680
    %v701 = vpack.c.b16 %v683, %v681
    %v702 = vpack.c.b16 %v686, %v684
    %v703 = vpack.c.b16 %v687, %v685
    %720 = vmatprep.subr.bf16.mxu0 %v689
    %721 = vmatpush1.bf16.msra.mxu0 %v688
    %722 = vmatprep.subr.bf16.mxu0 %v691
    %723 = vmatpush1.bf16.msra.mxu0 %v690
    %724 = vmatprep.subr.bf16.mxu0 %v693
    %725 = vmatpush1.bf16.msra.mxu0 %v692
    %726 = vmatprep.subr.bf16.mxu0 %v695
    %727 = vmatpush1.bf16.msra.mxu0 %v694
    %728 = vmatprep.subr.bf16.mxu0 %v697
    %729 = vmatpush1.bf16.msra.mxu0 %v696
    %730 = vmatprep.subr.bf16.mxu0 %v699
    %731 = vmatpush1.bf16.msra.mxu0 %v698
    %732 = vmatprep.subr.bf16.mxu0 %v701
    %733 = vmatpush1.bf16.msra.mxu0 %v700
    %734 = vmatprep.subr.bf16.mxu0 %v703
    %735 = vmatpush1.bf16.msra.mxu0 %v702
    %736 = vmatprep.subr.bf16.mxu0 0
    %737 = vmatpush1.bf16.msra.mxu0 0
    %738 = vmatprep.subr.bf16.mxu0 0
    %739 = vmatpush1.bf16.msra.mxu0 0
    %740 = vmatprep.subr.bf16.mxu0 0
    %741 = vmatpush1.bf16.msra.mxu0 0
    %742 = vmatprep.subr.bf16.mxu0 0
    %743 = vmatpush1.bf16.msra.mxu0 0
    %744 = vmatprep.subr.bf16.mxu0 0
    %745 = vmatpush1.bf16.msra.mxu0 0
    %746 = vmatprep.subr.bf16.mxu0 0
    %747 = vmatpush1.bf16.msra.mxu0 0
    %748 = vmatprep.subr.bf16.mxu0 0
    %749 = vmatpush1.bf16.msra.mxu0 0
    %750 = vmatprep.subr.bf16.mxu0 0
    %751 = vmatpush1.bf16.msra.mxu0 0
    %752 = vmatprep.mubr.bf16.mxu0 0
    %753 = vmatmul.mubr.bf16.gmra.mrb[0].mxu0 %v484
    %v754 = vpop.f32.mrb[0].mxu0
    %v755 = vadd.f32 %v634, %v754
    %v756 = vpop.f32.mrb[0].mxu0
    %v757 = vadd.f32 %v636, %v756
    %v758 = vpop.f32.mrb[0].mxu0
    %v759 = vpop.f32.mrb[0].mxu0
    %760 = vdwg.mxu0
    %v761 = vpack.c.bf16 %v479, %v479
    %s762 = scalar_lea.vmem [#allocation2], 256
    %v763 = vld [vmem:[%s762] sm:$0xff]
    %v764 = vld [vmem:[%s762 + $0x8] sm:$0xff]
    %v765 = vld [vmem:[%s762 + $0x10] sm:$0xff]
    %v766 = vld [vmem:[%s762 + $0x18] sm:$0xff]
    %v767 = vld [vmem:[%s762 + $0x20] sm:$0xff]
    %v768 = vld [vmem:[%s762 + $0x28] sm:$0xff]
    %v769 = vld [vmem:[%s762 + $0x30] sm:$0xff]
    %v770 = vld [vmem:[%s762 + $0x38] sm:$0xff]
    %v771 = vld [vmem:[%s762 + $0x40] sm:$0xff]
    %v772 = vld [vmem:[%s762 + $0x48] sm:$0xff]
    %v773 = vld [vmem:[%s762 + $0x50] sm:$0xff]
    %v774 = vld [vmem:[%s762 + $0x58] sm:$0xff]
    %v775 = vld [vmem:[%s762 + $0x60] sm:$0xff]
    %v776 = vld [vmem:[%s762 + $0x68] sm:$0xff]
    %v777 = vld [vmem:[%s762 + $0x70] sm:$0xff]
    %v778 = vld [vmem:[%s762 + $0x78] sm:$0xff]
    %v795 = vunpack.c.l.b16 %v763
    %v796 = vunpack.c.h.b16 %v763
    %v797 = vunpack.c.l.b16 %v764
    %v798 = vunpack.c.h.b16 %v764
    %v799 = vunpack.c.l.b16 %v765
    %v800 = vunpack.c.h.b16 %v765
    %v801 = vunpack.c.l.b16 %v766
    %v802 = vunpack.c.h.b16 %v766
    %v803 = vunpack.c.l.b16 %v767
    %v804 = vunpack.c.h.b16 %v767
    %v805 = vunpack.c.l.b16 %v768
    %v806 = vunpack.c.h.b16 %v768
    %v807 = vunpack.c.l.b16 %v769
    %v808 = vunpack.c.h.b16 %v769
    %v809 = vunpack.c.l.b16 %v770
    %v810 = vunpack.c.h.b16 %v770
    %v811 = vunpack.c.l.b16 %v771
    %v812 = vunpack.c.h.b16 %v771
    %v813 = vunpack.c.l.b16 %v772
    %v814 = vunpack.c.h.b16 %v772
    %v815 = vunpack.c.l.b16 %v773
    %v816 = vunpack.c.h.b16 %v773
    %v817 = vunpack.c.l.b16 %v774
    %v818 = vunpack.c.h.b16 %v774
    %v819 = vunpack.c.l.b16 %v775
    %v820 = vunpack.c.h.b16 %v775
    %v821 = vunpack.c.l.b16 %v776
    %v822 = vunpack.c.h.b16 %v776
    %v823 = vunpack.c.l.b16 %v777
    %v824 = vunpack.c.h.b16 %v777
    %v825 = vunpack.c.l.b16 %v778
    %v826 = vunpack.c.h.b16 %v778
    %v827 = vpack.c.b16 %v797, %v795
    %v828 = vpack.c.b16 %v798, %v796
    %v829 = vpack.c.b16 %v801, %v799
    %v830 = vpack.c.b16 %v802, %v800
    %v831 = vpack.c.b16 %v805, %v803
    %v832 = vpack.c.b16 %v806, %v804
    %v833 = vpack.c.b16 %v809, %v807
    %v834 = vpack.c.b16 %v810, %v808
    %v835 = vpack.c.b16 %v813, %v811
    %v836 = vpack.c.b16 %v814, %v812
    %v837 = vpack.c.b16 %v817, %v815
    %v838 = vpack.c.b16 %v818, %v816
    %v839 = vpack.c.b16 %v821, %v819
    %v840 = vpack.c.b16 %v822, %v820
    %v841 = vpack.c.b16 %v825, %v823
    %v842 = vpack.c.b16 %v826, %v824
    %859 = vmatprep.subr.bf16.mxu0 %v828
    %860 = vmatpush1.bf16.msra.mxu0 %v827
    %861 = vmatprep.subr.bf16.mxu0 %v830
    %862 = vmatpush1.bf16.msra.mxu0 %v829
    %863 = vmatprep.subr.bf16.mxu0 %v832
    %864 = vmatpush1.bf16.msra.mxu0 %v831
    %865 = vmatprep.subr.bf16.mxu0 %v834
    %866 = vmatpush1.bf16.msra.mxu0 %v833
    %867 = vmatprep.subr.bf16.mxu0 %v836
    %868 = vmatpush1.bf16.msra.mxu0 %v835
    %869 = vmatprep.subr.bf16.mxu0 %v838
    %870 = vmatpush1.bf16.msra.mxu0 %v837
    %871 = vmatprep.subr.bf16.mxu0 %v840
    %872 = vmatpush1.bf16.msra.mxu0 %v839
    %873 = vmatprep.subr.bf16.mxu0 %v842
    %874 = vmatpush1.bf16.msra.mxu0 %v841
    %875 = vmatprep.subr.bf16.mxu0 0
    %876 = vmatpush1.bf16.msra.mxu0 0
    %877 = vmatprep.subr.bf16.mxu0 0
    %878 = vmatpush1.bf16.msra.mxu0 0
    %879 = vmatprep.subr.bf16.mxu0 0
    %880 = vmatpush1.bf16.msra.mxu0 0
    %881 = vmatprep.subr.bf16.mxu0 0
    %882 = vmatpush1.bf16.msra.mxu0 0
    %883 = vmatprep.subr.bf16.mxu0 0
    %884 = vmatpush1.bf16.msra.mxu0 0
    %885 = vmatprep.subr.bf16.mxu0 0
    %886 = vmatpush1.bf16.msra.mxu0 0
    %887 = vmatprep.subr.bf16.mxu0 0
    %888 = vmatpush1.bf16.msra.mxu0 0
    %889 = vmatprep.subr.bf16.mxu0 0
    %890 = vmatpush1.bf16.msra.mxu0 0
    %891 = vmatprep.mubr.bf16.mxu0 0
    %892 = vmatmul.mubr.bf16.gmra.mrb[0].mxu0 %v761
    %v893 = vpop.f32.mrb[0].mxu0
    %v894 = vadd.f32 0.0, %v893
    %v895 = vpop.f32.mrb[0].mxu0
    %v896 = vadd.f32 0.0, %v895
    %v897 = vpop.f32.mrb[0].mxu0
    %v898 = vpop.f32.mrb[0].mxu0
    %899 = vdwg.mxu0
    %v900 = vadd.f32 %v755, %v894
    %v901 = vadd.f32 %v757, %v896
    %v902 = vld [vmem:[%s7] sm:$0x3]
    %v904 = vlaneseq
    %v905 = vshrl.u32 %v904, 7
    %v906 = vsub.s32 0, %v905
    %v907 = vrot.slane %v902, %v906
    %v908 = vlaneseq
    %v909 = vshrl.u32 %v908, 7
    %v910 = vsub.s32 1, %v909
    %v911 = vrot.slane %v902, %v910
    %v914 = vadd.f32 %v900, %v907
    %v915 = vadd.f32 %v901, %v911
    %v916 = vld [vmem:[%s10] sm:$0xf]
    %v917 = vld [vmem:[%s10 + $0x4] sm:$0xf]
    %v918 = vpack.c.bf16 %v914, %v914
    %v919 = vpack.c.bf16 %v915, %v915
    %v922 = vunpack.c.l.b16 %v916
    %v923 = vunpack.c.l.b16 %v917
    %v924 = vpack.c.b16 %v923, %v922
    %v926 = vsel %vm133, %v924, 0
    %v929 = vsel %vm140, %v918, 0
    %v932 = vsel %vm140, %v919, 0
    %934 = vmatprep.subr.bf16.mxu0 %v932
    %935 = vmatpush1.bf16.msra.mxu0 %v929
    %936 = vmatprep.subr.bf16.mxu0 0
    %937 = vmatpush1.bf16.msra.mxu0 0
    %938 = vmatprep.subr.bf16.mxu0 0
    %939 = vmatpush1.bf16.msra.mxu0 0
    %940 = vmatprep.subr.bf16.mxu0 0
    %941 = vmatpush1.bf16.msra.mxu0 0
    %942 = vmatprep.subr.bf16.mxu0 0
    %943 = vmatpush1.bf16.msra.mxu0 0
    %944 = vmatprep.subr.bf16.mxu0 0
    %945 = vmatpush1.bf16.msra.mxu0 0
    %946 = vmatprep.subr.bf16.mxu0 0
    %947 = vmatpush1.bf16.msra.mxu0 0
    %948 = vmatprep.subr.bf16.mxu0 0
    %949 = vmatpush1.bf16.msra.mxu0 0
    %950 = vmatprep.subr.bf16.mxu0 0
    %951 = vmatpush1.bf16.msra.mxu0 0
    %952 = vmatprep.subr.bf16.mxu0 0
    %953 = vmatpush1.bf16.msra.mxu0 0
    %954 = vmatprep.subr.bf16.mxu0 0
    %955 = vmatpush1.bf16.msra.mxu0 0
    %956 = vmatprep.subr.bf16.mxu0 0
    %957 = vmatpush1.bf16.msra.mxu0 0
    %958 = vmatprep.subr.bf16.mxu0 0
    %959 = vmatpush1.bf16.msra.mxu0 0
    %960 = vmatprep.subr.bf16.mxu0 0
    %961 = vmatpush1.bf16.msra.mxu0 0
    %962 = vmatprep.subr.bf16.mxu0 0
    %963 = vmatpush1.bf16.msra.mxu0 0
    %964 = vmatprep.subr.bf16.mxu0 0
    %965 = vmatpush1.bf16.msra.mxu0 0
    %966 = vmatprep.mubr.bf16.mxu0 0
    %967 = vmatmul.mubr.bf16.gmra.mrb[0].mxu0 %v926
    %v968 = vpop.f32.mrb[0].mxu0
    %v969 = vadd.f32 0.0, %v968
    %v970 = vpop.f32.mrb[0].mxu0
    %v971 = vadd.f32 0.0, %v970
    %v972 = vpop.f32.mrb[0].mxu0
    %v973 = vadd.f32 0.0, %v972
    %v974 = vpop.f32.mrb[0].mxu0
    %v975 = vadd.f32 0.0, %v974
    %976 = vdwg.mxu0
    %v977 = vpack.c.bf16 %v973, %v969
    %v978 = vpack.c.bf16 %v975, %v971
    %v979 = vld [vmem:[%s11] sm:$0xff]
    %v980 = vld [vmem:[%s11 + $0x8] sm:$0xff]
    %v981 = vld [vmem:[%s11 + $0x10] sm:$0xff]
    %v982 = vld [vmem:[%s11 + $0x18] sm:$0xff]
    %v983 = vld [vmem:[%s11 + $0x20] sm:$0xff]
    %v984 = vld [vmem:[%s11 + $0x28] sm:$0xff]
    %v985 = vld [vmem:[%s11 + $0x30] sm:$0xff]
    %v986 = vld [vmem:[%s11 + $0x38] sm:$0xff]
    %v987 = vld [vmem:[%s11 + $0x40] sm:$0xff]
    %v988 = vld [vmem:[%s11 + $0x48] sm:$0xff]
    %v989 = vld [vmem:[%s11 + $0x50] sm:$0xff]
    %v990 = vld [vmem:[%s11 + $0x58] sm:$0xff]
    %v991 = vld [vmem:[%s11 + $0x60] sm:$0xff]
    %v992 = vld [vmem:[%s11 + $0x68] sm:$0xff]
    %v993 = vld [vmem:[%s11 + $0x70] sm:$0xff]
    %v994 = vld [vmem:[%s11 + $0x78] sm:$0xff]
    %v995 = vld [vmem:[%s11 + $0x80] sm:$0xff]
    %v996 = vld [vmem:[%s11 + $0x88] sm:$0xff]
    %v997 = vld [vmem:[%s11 + $0x90] sm:$0xff]
    %v998 = vld [vmem:[%s11 + $0x98] sm:$0xff]
    %v999 = vld [vmem:[%s11 + $0xa0] sm:$0xff]
    %v1000 = vld [vmem:[%s11 + $0xa8] sm:$0xff]
    %v1001 = vld [vmem:[%s11 + $0xb0] sm:$0xff]
    %v1002 = vld [vmem:[%s11 + $0xb8] sm:$0xff]
    %v1003 = vld [vmem:[%s11 + $0xc0] sm:$0xff]
    %v1004 = vld [vmem:[%s11 + $0xc8] sm:$0xff]
    %v1005 = vld [vmem:[%s11 + $0xd0] sm:$0xff]
    %v1006 = vld [vmem:[%s11 + $0xd8] sm:$0xff]
    %v1007 = vld [vmem:[%s11 + $0xe0] sm:$0xff]
    %v1008 = vld [vmem:[%s11 + $0xe8] sm:$0xff]
    %v1009 = vld [vmem:[%s11 + $0xf0] sm:$0xff]
    %v1010 = vld [vmem:[%s11 + $0xf8] sm:$0xff]
    %v1011 = vld [vmem:[%s11 + $0x100] sm:$0xff]
    %v1012 = vld [vmem:[%s11 + $0x108] sm:$0xff]
    %v1013 = vld [vmem:[%s11 + $0x110] sm:$0xff]
    %v1014 = vld [vmem:[%s11 + $0x118] sm:$0xff]
    %v1015 = vld [vmem:[%s11 + $0x120] sm:$0xff]
    %v1016 = vld [vmem:[%s11 + $0x128] sm:$0xff]
    %v1017 = vld [vmem:[%s11 + $0x130] sm:$0xff]
    %v1018 = vld [vmem:[%s11 + $0x138] sm:$0xff]
    %v1019 = vld [vmem:[%s11 + $0x140] sm:$0xff]
    %v1020 = vld [vmem:[%s11 + $0x148] sm:$0xff]
    %v1021 = vld [vmem:[%s11 + $0x150] sm:$0xff]
    %v1022 = vld [vmem:[%s11 + $0x158] sm:$0xff]
    %v1023 = vld [vmem:[%s11 + $0x160] sm:$0xff]
    %v1024 = vld [vmem:[%s11 + $0x168] sm:$0xff]
    %v1025 = vld [vmem:[%s11 + $0x170] sm:$0xff]
    %v1026 = vld [vmem:[%s11 + $0x178] sm:$0xff]
    %v1027 = vld [vmem:[%s11 + $0x180] sm:$0xff]
    %v1028 = vld [vmem:[%s11 + $0x188] sm:$0xff]
    %v1029 = vld [vmem:[%s11 + $0x190] sm:$0xff]
    %v1030 = vld [vmem:[%s11 + $0x198] sm:$0xff]
    %v1031 = vld [vmem:[%s11 + $0x1a0] sm:$0xff]
    %v1032 = vld [vmem:[%s11 + $0x1a8] sm:$0xff]
    %v1033 = vld [vmem:[%s11 + $0x1b0] sm:$0xff]
    %v1034 = vld [vmem:[%s11 + $0x1b8] sm:$0xff]
    %v1035 = vld [vmem:[%s11 + $0x1c0] sm:$0xff]
    %v1036 = vld [vmem:[%s11 + $0x1c8] sm:$0xff]
    %v1037 = vld [vmem:[%s11 + $0x1d0] sm:$0xff]
    %v1038 = vld [vmem:[%s11 + $0x1d8] sm:$0xff]
    %v1039 = vld [vmem:[%s11 + $0x1e0] sm:$0xff]
    %v1040 = vld [vmem:[%s11 + $0x1e8] sm:$0xff]
    %v1041 = vld [vmem:[%s11 + $0x1f0] sm:$0xff]
    %v1042 = vld [vmem:[%s11 + $0x1f8] sm:$0xff]
    %v1107 = vunpack.c.l.b16 %v979
    %v1108 = vunpack.c.h.b16 %v979
    %v1109 = vunpack.c.l.b16 %v980
    %v1110 = vunpack.c.h.b16 %v980
    %v1111 = vunpack.c.l.b16 %v981
    %v1112 = vunpack.c.h.b16 %v981
    %v1113 = vunpack.c.l.b16 %v982
    %v1114 = vunpack.c.h.b16 %v982
    %v1115 = vunpack.c.l.b16 %v983
    %v1116 = vunpack.c.h.b16 %v983
    %v1117 = vunpack.c.l.b16 %v984
    %v1118 = vunpack.c.h.b16 %v984
    %v1119 = vunpack.c.l.b16 %v985
    %v1120 = vunpack.c.h.b16 %v985
    %v1121 = vunpack.c.l.b16 %v986
    %v1122 = vunpack.c.h.b16 %v986
    %v1123 = vunpack.c.l.b16 %v987
    %v1124 = vunpack.c.h.b16 %v987
    %v1125 = vunpack.c.l.b16 %v988
    %v1126 = vunpack.c.h.b16 %v988
    %v1127 = vunpack.c.l.b16 %v989
    %v1128 = vunpack.c.h.b16 %v989
    %v1129 = vunpack.c.l.b16 %v990
    %v1130 = vunpack.c.h.b16 %v990
    %v1131 = vunpack.c.l.b16 %v991
    %v1132 = vunpack.c.h.b16 %v991
    %v1133 = vunpack.c.l.b16 %v992
    %v1134 = vunpack.c.h.b16 %v992
    %v1135 = vunpack.c.l.b16 %v993
    %v1136 = vunpack.c.h.b16 %v993
    %v1137 = vunpack.c.l.b16 %v994
    %v1138 = vunpack.c.h.b16 %v994
    %v1139 = vunpack.c.l.b16 %v995
    %v1140 = vunpack.c.h.b16 %v995
    %v1141 = vunpack.c.l.b16 %v996
    %v1142 = vunpack.c.h.b16 %v996
    %v1143 = vunpack.c.l.b16 %v997
    %v1144 = vunpack.c.h.b16 %v997
    %v1145 = vunpack.c.l.b16 %v998
    %v1146 = vunpack.c.h.b16 %v998
    %v1147 = vunpack.c.l.b16 %v999
    %v1148 = vunpack.c.h.b16 %v999
    %v1149 = vunpack.c.l.b16 %v1000
    %v1150 = vunpack.c.h.b16 %v1000
    %v1151 = vunpack.c.l.b16 %v1001
    %v1152 = vunpack.c.h.b16 %v1001
    %v1153 = vunpack.c.l.b16 %v1002
    %v1154 = vunpack.c.h.b16 %v1002
    %v1155 = vunpack.c.l.b16 %v1003
    %v1156 = vunpack.c.h.b16 %v1003
    %v1157 = vunpack.c.l.b16 %v1004
    %v1158 = vunpack.c.h.b16 %v1004
    %v1159 = vunpack.c.l.b16 %v1005
    %v1160 = vunpack.c.h.b16 %v1005
    %v1161 = vunpack.c.l.b16 %v1006
    %v1162 = vunpack.c.h.b16 %v1006
    %v1163 = vunpack.c.l.b16 %v1007
    %v1164 = vunpack.c.h.b16 %v1007
    %v1165 = vunpack.c.l.b16 %v1008
    %v1166 = vunpack.c.h.b16 %v1008
    %v1167 = vunpack.c.l.b16 %v1009
    %v1168 = vunpack.c.h.b16 %v1009
    %v1169 = vunpack.c.l.b16 %v1010
    %v1170 = vunpack.c.h.b16 %v1010
    %v1171 = vunpack.c.l.b16 %v1011
    %v1172 = vunpack.c.h.b16 %v1011
    %v1173 = vunpack.c.l.b16 %v1012
    %v1174 = vunpack.c.h.b16 %v1012
    %v1175 = vunpack.c.l.b16 %v1013
    %v1176 = vunpack.c.h.b16 %v1013
    %v1177 = vunpack.c.l.b16 %v1014
    %v1178 = vunpack.c.h.b16 %v1014
    %v1179 = vunpack.c.l.b16 %v1015
    %v1180 = vunpack.c.h.b16 %v1015
    %v1181 = vunpack.c.l.b16 %v1016
    %v1182 = vunpack.c.h.b16 %v1016
    %v1183 = vunpack.c.l.b16 %v1017
    %v1184 = vunpack.c.h.b16 %v1017
    %v1185 = vunpack.c.l.b16 %v1018
    %v1186 = vunpack.c.h.b16 %v1018
    %v1187 = vunpack.c.l.b16 %v1019
    %v1188 = vunpack.c.h.b16 %v1019
    %v1189 = vunpack.c.l.b16 %v1020
    %v1190 = vunpack.c.h.b16 %v1020
    %v1191 = vunpack.c.l.b16 %v1021
    %v1192 = vunpack.c.h.b16 %v1021
    %v1193 = vunpack.c.l.b16 %v1022
    %v1194 = vunpack.c.h.b16 %v1022
    %v1195 = vunpack.c.l.b16 %v1023
    %v1196 = vunpack.c.h.b16 %v1023
    %v1197 = vunpack.c.l.b16 %v1024
    %v1198 = vunpack.c.h.b16 %v1024
    %v1199 = vunpack.c.l.b16 %v1025
    %v1200 = vunpack.c.h.b16 %v1025
    %v1201 = vunpack.c.l.b16 %v1026
    %v1202 = vunpack.c.h.b16 %v1026
    %v1203 = vunpack.c.l.b16 %v1027
    %v1204 = vunpack.c.h.b16 %v1027
    %v1205 = vunpack.c.l.b16 %v1028
    %v1206 = vunpack.c.h.b16 %v1028
    %v1207 = vunpack.c.l.b16 %v1029
    %v1208 = vunpack.c.h.b16 %v1029
    %v1209 = vunpack.c.l.b16 %v1030
    %v1210 = vunpack.c.h.b16 %v1030
    %v1211 = vunpack.c.l.b16 %v1031
    %v1212 = vunpack.c.h.b16 %v1031
    %v1213 = vunpack.c.l.b16 %v1032
    %v1214 = vunpack.c.h.b16 %v1032
    %v1215 = vunpack.c.l.b16 %v1033
    %v1216 = vunpack.c.h.b16 %v1033
    %v1217 = vunpack.c.l.b16 %v1034
    %v1218 = vunpack.c.h.b16 %v1034
    %v1219 = vunpack.c.l.b16 %v1035
    %v1220 = vunpack.c.h.b16 %v1035
    %v1221 = vunpack.c.l.b16 %v1036
    %v1222 = vunpack.c.h.b16 %v1036
    %v1223 = vunpack.c.l.b16 %v1037
    %v1224 = vunpack.c.h.b16 %v1037
    %v1225 = vunpack.c.l.b16 %v1038
    %v1226 = vunpack.c.h.b16 %v1038
    %v1227 = vunpack.c.l.b16 %v1039
    %v1228 = vunpack.c.h.b16 %v1039
    %v1229 = vunpack.c.l.b16 %v1040
    %v1230 = vunpack.c.h.b16 %v1040
    %v1231 = vunpack.c.l.b16 %v1041
    %v1232 = vunpack.c.h.b16 %v1041
    %v1233 = vunpack.c.l.b16 %v1042
    %v1234 = vunpack.c.h.b16 %v1042
    %v1235 = vpack.c.b16 %v1111, %v1107
    %v1236 = vpack.c.b16 %v1112, %v1108
    %v1237 = vpack.c.b16 %v1113, %v1109
    %v1238 = vpack.c.b16 %v1114, %v1110
    %v1239 = vpack.c.b16 %v1119, %v1115
    %v1240 = vpack.c.b16 %v1120, %v1116
    %v1241 = vpack.c.b16 %v1121, %v1117
    %v1242 = vpack.c.b16 %v1122, %v1118
    %v1243 = vpack.c.b16 %v1127, %v1123
    %v1244 = vpack.c.b16 %v1128, %v1124
    %v1245 = vpack.c.b16 %v1129, %v1125
    %v1246 = vpack.c.b16 %v1130, %v1126
    %v1247 = vpack.c.b16 %v1135, %v1131
    %v1248 = vpack.c.b16 %v1136, %v1132
    %v1249 = vpack.c.b16 %v1137, %v1133
    %v1250 = vpack.c.b16 %v1138, %v1134
    %v1251 = vpack.c.b16 %v1143, %v1139
    %v1252 = vpack.c.b16 %v1144, %v1140
    %v1253 = vpack.c.b16 %v1145, %v1141
    %v1254 = vpack.c.b16 %v1146, %v1142
    %v1255 = vpack.c.b16 %v1151, %v1147
    %v1256 = vpack.c.b16 %v1152, %v1148
    %v1257 = vpack.c.b16 %v1153, %v1149
    %v1258 = vpack.c.b16 %v1154, %v1150
    %v1259 = vpack.c.b16 %v1159, %v1155
    %v1260 = vpack.c.b16 %v1160, %v1156
    %v1261 = vpack.c.b16 %v1161, %v1157
    %v1262 = vpack.c.b16 %v1162, %v1158
    %v1263 = vpack.c.b16 %v1167, %v1163
    %v1264 = vpack.c.b16 %v1168, %v1164
    %v1265 = vpack.c.b16 %v1169, %v1165
    %v1266 = vpack.c.b16 %v1170, %v1166
    %v1267 = vpack.c.b16 %v1175, %v1171
    %v1268 = vpack.c.b16 %v1176, %v1172
    %v1269 = vpack.c.b16 %v1177, %v1173
    %v1270 = vpack.c.b16 %v1178, %v1174
    %v1271 = vpack.c.b16 %v1183, %v1179
    %v1272 = vpack.c.b16 %v1184, %v1180
    %v1273 = vpack.c.b16 %v1185, %v1181
    %v1274 = vpack.c.b16 %v1186, %v1182
    %v1275 = vpack.c.b16 %v1191, %v1187
    %v1276 = vpack.c.b16 %v1192, %v1188
    %v1277 = vpack.c.b16 %v1193, %v1189
    %v1278 = vpack.c.b16 %v1194, %v1190
    %v1279 = vpack.c.b16 %v1199, %v1195
    %v1280 = vpack.c.b16 %v1200, %v1196
    %v1281 = vpack.c.b16 %v1201, %v1197
    %v1282 = vpack.c.b16 %v1202, %v1198
    %v1283 = vpack.c.b16 %v1207, %v1203
    %v1284 = vpack.c.b16 %v1208, %v1204
    %v1285 = vpack.c.b16 %v1209, %v1205
    %v1286 = vpack.c.b16 %v1210, %v1206
    %v1287 = vpack.c.b16 %v1215, %v1211
    %v1288 = vpack.c.b16 %v1216, %v1212
    %v1289 = vpack.c.b16 %v1217, %v1213
    %v1290 = vpack.c.b16 %v1218, %v1214
    %v1291 = vpack.c.b16 %v1223, %v1219
    %v1292 = vpack.c.b16 %v1224, %v1220
    %v1293 = vpack.c.b16 %v1225, %v1221
    %v1294 = vpack.c.b16 %v1226, %v1222
    %v1295 = vpack.c.b16 %v1231, %v1227
    %v1296 = vpack.c.b16 %v1232, %v1228
    %v1297 = vpack.c.b16 %v1233, %v1229
    %v1298 = vpack.c.b16 %v1234, %v1230
    %1363 = vmatprep.subr.bf16.mxu0 %v1236
    %1364 = vmatpush1.bf16.msra.mxu0 %v1235
    %1365 = vmatprep.subr.bf16.mxu0 %v1240
    %1366 = vmatpush1.bf16.msra.mxu0 %v1239
    %1367 = vmatprep.subr.bf16.mxu0 %v1244
    %1368 = vmatpush1.bf16.msra.mxu0 %v1243
    %1369 = vmatprep.subr.bf16.mxu0 %v1248
    %1370 = vmatpush1.bf16.msra.mxu0 %v1247
    %1371 = vmatprep.subr.bf16.mxu0 %v1252
    %1372 = vmatpush1.bf16.msra.mxu0 %v1251
    %1373 = vmatprep.subr.bf16.mxu0 %v1256
    %1374 = vmatpush1.bf16.msra.mxu0 %v1255
    %1375 = vmatprep.subr.bf16.mxu0 %v1260
    %1376 = vmatpush1.bf16.msra.mxu0 %v1259
    %1377 = vmatprep.subr.bf16.mxu0 %v1264
    %1378 = vmatpush1.bf16.msra.mxu0 %v1263
    %1379 = vmatprep.subr.bf16.mxu0 %v1268
    %1380 = vmatpush1.bf16.msra.mxu0 %v1267
    %1381 = vmatprep.subr.bf16.mxu0 %v1272
    %1382 = vmatpush1.bf16.msra.mxu0 %v1271
    %1383 = vmatprep.subr.bf16.mxu0 %v1276
    %1384 = vmatpush1.bf16.msra.mxu0 %v1275
    %1385 = vmatprep.subr.bf16.mxu0 %v1280
    %1386 = vmatpush1.bf16.msra.mxu0 %v1279
    %1387 = vmatprep.subr.bf16.mxu0 %v1284
    %1388 = vmatpush1.bf16.msra.mxu0 %v1283
    %1389 = vmatprep.subr.bf16.mxu0 %v1288
    %1390 = vmatpush1.bf16.msra.mxu0 %v1287
    %1391 = vmatprep.subr.bf16.mxu0 %v1292
    %1392 = vmatpush1.bf16.msra.mxu0 %v1291
    %1393 = vmatprep.subr.bf16.mxu0 %v1296
    %1394 = vmatpush1.bf16.msra.mxu0 %v1295
    %1395 = vmatprep.mubr.bf16.mxu0 %v978
    %1396 = vmatmul.mubr.bf16.gmra.mrb[0].mxu0 %v977
    %v1397 = vpop.f32.mrb[0].mxu0
    %v1398 = vadd.f32 0.0, %v1397
    %v1399 = vpop.f32.mrb[0].mxu0
    %v1400 = vadd.f32 0.0, %v1399
    %v1401 = vpop.f32.mrb[0].mxu0
    %v1402 = vadd.f32 0.0, %v1401
    %v1403 = vpop.f32.mrb[0].mxu0
    %v1404 = vadd.f32 0.0, %v1403
    %1405 = vdwg.mxu0
    %1406 = vmatprep.subr.bf16.mxu0 %v1238
    %1407 = vmatpush1.bf16.msra.mxu0 %v1237
    %1408 = vmatprep.subr.bf16.mxu0 %v1242
    %1409 = vmatpush1.bf16.msra.mxu0 %v1241
    %1410 = vmatprep.subr.bf16.mxu0 %v1246
    %1411 = vmatpush1.bf16.msra.mxu0 %v1245
    %1412 = vmatprep.subr.bf16.mxu0 %v1250
    %1413 = vmatpush1.bf16.msra.mxu0 %v1249
    %1414 = vmatprep.subr.bf16.mxu0 %v1254
    %1415 = vmatpush1.bf16.msra.mxu0 %v1253
    %1416 = vmatprep.subr.bf16.mxu0 %v1258
    %1417 = vmatpush1.bf16.msra.mxu0 %v1257
    %1418 = vmatprep.subr.bf16.mxu0 %v1262
    %1419 = vmatpush1.bf16.msra.mxu0 %v1261
    %1420 = vmatprep.subr.bf16.mxu0 %v1266
    %1421 = vmatpush1.bf16.msra.mxu0 %v1265
    %1422 = vmatprep.subr.bf16.mxu0 %v1270
    %1423 = vmatpush1.bf16.msra.mxu0 %v1269
    %1424 = vmatprep.subr.bf16.mxu0 %v1274
    %1425 = vmatpush1.bf16.msra.mxu0 %v1273
    %1426 = vmatprep.subr.bf16.mxu0 %v1278
    %1427 = vmatpush1.bf16.msra.mxu0 %v1277
    %1428 = vmatprep.subr.bf16.mxu0 %v1282
    %1429 = vmatpush1.bf16.msra.mxu0 %v1281
    %1430 = vmatprep.subr.bf16.mxu0 %v1286
    %1431 = vmatpush1.bf16.msra.mxu0 %v1285
    %1432 = vmatprep.subr.bf16.mxu0 %v1290
    %1433 = vmatpush1.bf16.msra.mxu0 %v1289
    %1434 = vmatprep.subr.bf16.mxu0 %v1294
    %1435 = vmatpush1.bf16.msra.mxu0 %v1293
    %1436 = vmatprep.subr.bf16.mxu0 %v1298
    %1437 = vmatpush1.bf16.msra.mxu0 %v1297
    %1438 = vmatprep.mubr.bf16.mxu0 %v978
    %1439 = vmatmul.mubr.bf16.gmra.mrb[0].mxu0 %v977
    %v1440 = vpop.f32.mrb[0].mxu0
    %v1441 = vadd.f32 0.0, %v1440
    %v1442 = vpop.f32.mrb[0].mxu0
    %v1443 = vadd.f32 0.0, %v1442
    %v1444 = vpop.f32.mrb[0].mxu0
    %v1445 = vadd.f32 0.0, %v1444
    %v1446 = vpop.f32.mrb[0].mxu0
    %v1447 = vadd.f32 0.0, %v1446
    %1448 = vdwg.mxu0
    %1449 = vst [vmem:[#allocation6] sm:$0xff] %v1398
    %1450 = vst [vmem:[#allocation6 + $0x8] sm:$0xff] %v1400
    %1451 = vst [vmem:[#allocation6 + $0x10] sm:$0xff] %v1441
    %1452 = vst [vmem:[#allocation6 + $0x18] sm:$0xff] %v1443
    %1453 = vst [vmem:[#allocation6 + $0x20] sm:$0xff] %v1402
    %1454 = vst [vmem:[#allocation6 + $0x28] sm:$0xff] %v1404
    %1455 = vst [vmem:[#allocation6 + $0x30] sm:$0xff] %v1445
    %1456 = vst [vmem:[#allocation6 + $0x38] sm:$0xff] %v1447
    %v1457 = vld [vmem:[%s8] sm:$0xf]
    %v1458 = vld [vmem:[%s8 + $0x4] sm:$0xf]
    %v1459 = vld [vmem:[%s8 + $0x8] sm:$0xf]
    %v1460 = vld [vmem:[%s8 + $0xc] sm:$0xf]
    %v1461 = vld [vmem:[%s8 + $0x10] sm:$0xf]
    %v1462 = vld [vmem:[%s8 + $0x14] sm:$0xf]
    %v1463 = vld [vmem:[%s8 + $0x18] sm:$0xf]
    %v1464 = vld [vmem:[%s8 + $0x1c] sm:$0xf]
    %v1465 = vld [vmem:[%s8 + $0x20] sm:$0xf]
    %v1466 = vld [vmem:[%s8 + $0x24] sm:$0xf]
    %v1467 = vld [vmem:[%s8 + $0x28] sm:$0xf]
    %v1468 = vld [vmem:[%s8 + $0x2c] sm:$0xf]
    %v1469 = vld [vmem:[%s8 + $0x30] sm:$0xf]
    %v1470 = vld [vmem:[%s8 + $0x34] sm:$0xf]
    %v1471 = vld [vmem:[%s8 + $0x38] sm:$0xf]
    %v1472 = vld [vmem:[%s8 + $0x3c] sm:$0xf]
    %v1473 = vld [vmem:[%s8 + $0x40] sm:$0xf]
    %v1474 = vld [vmem:[%s8 + $0x44] sm:$0xf]
    %v1475 = vld [vmem:[%s8 + $0x48] sm:$0xf]
    %v1476 = vld [vmem:[%s8 + $0x4c] sm:$0xf]
    %v1477 = vld [vmem:[%s8 + $0x50] sm:$0xf]
    %v1478 = vld [vmem:[%s8 + $0x54] sm:$0xf]
    %v1479 = vld [vmem:[%s8 + $0x58] sm:$0xf]
    %v1480 = vld [vmem:[%s8 + $0x5c] sm:$0xf]
    %v1481 = vld [vmem:[%s8 + $0x60] sm:$0xf]
    %v1482 = vld [vmem:[%s8 + $0x64] sm:$0xf]
    %v1483 = vld [vmem:[%s8 + $0x68] sm:$0xf]
    %v1484 = vld [vmem:[%s8 + $0x6c] sm:$0xf]
    %v1485 = vld [vmem:[%s8 + $0x70] sm:$0xf]
    %v1486 = vld [vmem:[%s8 + $0x74] sm:$0xf]
    %v1487 = vld [vmem:[%s8 + $0x78] sm:$0xf]
    %v1488 = vld [vmem:[%s8 + $0x7c] sm:$0xf]
    %v1521 = vunpack.c.l.b16 %v1457
    %v1522 = vunpack.c.l.b16 %v1458
    %v1523 = vunpack.c.l.b16 %v1459
    %v1524 = vunpack.c.l.b16 %v1460
    %v1525 = vunpack.c.l.b16 %v1461
    %v1526 = vunpack.c.l.b16 %v1462
    %v1527 = vunpack.c.l.b16 %v1463
    %v1528 = vunpack.c.l.b16 %v1464
    %v1529 = vunpack.c.l.b16 %v1465
    %v1530 = vunpack.c.l.b16 %v1466
    %v1531 = vunpack.c.l.b16 %v1467
    %v1532 = vunpack.c.l.b16 %v1468
    %v1533 = vunpack.c.l.b16 %v1469
    %v1534 = vunpack.c.l.b16 %v1470
    %v1535 = vunpack.c.l.b16 %v1471
    %v1536 = vunpack.c.l.b16 %v1472
    %v1537 = vunpack.c.l.b16 %v1473
    %v1538 = vunpack.c.l.b16 %v1474
    %v1539 = vunpack.c.l.b16 %v1475
    %v1540 = vunpack.c.l.b16 %v1476
    %v1541 = vunpack.c.l.b16 %v1477
    %v1542 = vunpack.c.l.b16 %v1478
    %v1543 = vunpack.c.l.b16 %v1479
    %v1544 = vunpack.c.l.b16 %v1480
    %v1545 = vunpack.c.l.b16 %v1481
    %v1546 = vunpack.c.l.b16 %v1482
    %v1547 = vunpack.c.l.b16 %v1483
    %v1548 = vunpack.c.l.b16 %v1484
    %v1549 = vunpack.c.l.b16 %v1485
    %v1550 = vunpack.c.l.b16 %v1486
    %v1551 = vunpack.c.l.b16 %v1487
    %v1552 = vunpack.c.l.b16 %v1488
    %v1553 = vpack.c.b16 %v1522, %v1521
    %v1554 = vpack.c.b16 %v1524, %v1523
    %v1555 = vpack.c.b16 %v1526, %v1525
    %v1556 = vpack.c.b16 %v1528, %v1527
    %v1557 = vpack.c.b16 %v1530, %v1529
    %v1558 = vpack.c.b16 %v1532, %v1531
    %v1559 = vpack.c.b16 %v1534, %v1533
    %v1560 = vpack.c.b16 %v1536, %v1535
    %v1561 = vpack.c.b16 %v1538, %v1537
    %v1562 = vpack.c.b16 %v1540, %v1539
    %v1563 = vpack.c.b16 %v1542, %v1541
    %v1564 = vpack.c.b16 %v1544, %v1543
    %v1565 = vpack.c.b16 %v1546, %v1545
    %v1566 = vpack.c.b16 %v1548, %v1547
    %v1567 = vpack.c.b16 %v1550, %v1549
    %v1568 = vpack.c.b16 %v1552, %v1551
    %1585 = vmatprep.subr.bf16.mxu0 0
    %1586 = vmatpush1.bf16.msra.mxu0 %v1553
    %1587 = vmatprep.subr.bf16.mxu0 0
    %1588 = vmatpush1.bf16.msra.mxu0 %v1554
    %1589 = vmatprep.subr.bf16.mxu0 0
    %1590 = vmatpush1.bf16.msra.mxu0 %v1555
    %1591 = vmatprep.subr.bf16.mxu0 0
    %1592 = vmatpush1.bf16.msra.mxu0 %v1556
    %1593 = vmatprep.subr.bf16.mxu0 0
    %1594 = vmatpush1.bf16.msra.mxu0 %v1557
    %1595 = vmatprep.subr.bf16.mxu0 0
    %1596 = vmatpush1.bf16.msra.mxu0 %v1558
    %1597 = vmatprep.subr.bf16.mxu0 0
    %1598 = vmatpush1.bf16.msra.mxu0 %v1559
    %1599 = vmatprep.subr.bf16.mxu0 0
    %1600 = vmatpush1.bf16.msra.mxu0 %v1560
    %1601 = vmatprep.subr.bf16.mxu0 0
    %1602 = vmatpush1.bf16.msra.mxu0 %v1561
    %1603 = vmatprep.subr.bf16.mxu0 0
    %1604 = vmatpush1.bf16.msra.mxu0 %v1562
    %1605 = vmatprep.subr.bf16.mxu0 0
    %1606 = vmatpush1.bf16.msra.mxu0 %v1563
    %1607 = vmatprep.subr.bf16.mxu0 0
    %1608 = vmatpush1.bf16.msra.mxu0 %v1564
    %1609 = vmatprep.subr.bf16.mxu0 0
    %1610 = vmatpush1.bf16.msra.mxu0 %v1565
    %1611 = vmatprep.subr.bf16.mxu0 0
    %1612 = vmatpush1.bf16.msra.mxu0 %v1566
    %1613 = vmatprep.subr.bf16.mxu0 0
    %1614 = vmatpush1.bf16.msra.mxu0 %v1567
    %1615 = vmatprep.subr.bf16.mxu0 0
    %1616 = vmatpush1.bf16.msra.mxu0 %v1568
    %1617 = vmatprep.mubr.bf16.mxu0 %v919
    %1618 = vmatmul.mubr.bf16.gmra.mrb[0].mxu0 %v918
    %v1619 = vpop.f32.mrb[0].mxu0
    %v1620 = vadd.f32 0.0, %v1619
    %v1621 = vpop.f32.mrb[0].mxu0
    %v1622 = vpop.f32.mrb[0].mxu0
    %v1623 = vpop.f32.mrb[0].mxu0
    %1624 = vdwg.mxu0
    %v1625 = vpack.c.bf16 %v1620, %v1620
    %s1626 = scalar_lea.vmem %s8, 128
    %v1627 = vld [vmem:[%s1626] sm:$0xf]
    %v1628 = vld [vmem:[%s1626 + $0x4] sm:$0xf]
    %v1629 = vld [vmem:[%s1626 + $0x8] sm:$0xf]
    %v1630 = vld [vmem:[%s1626 + $0xc] sm:$0xf]
    %v1631 = vld [vmem:[%s1626 + $0x10] sm:$0xf]
    %v1632 = vld [vmem:[%s1626 + $0x14] sm:$0xf]
    %v1633 = vld [vmem:[%s1626 + $0x18] sm:$0xf]
    %v1634 = vld [vmem:[%s1626 + $0x1c] sm:$0xf]
    %v1635 = vld [vmem:[%s1626 + $0x20] sm:$0xf]
    %v1636 = vld [vmem:[%s1626 + $0x24] sm:$0xf]
    %v1637 = vld [vmem:[%s1626 + $0x28] sm:$0xf]
    %v1638 = vld [vmem:[%s1626 + $0x2c] sm:$0xf]
    %v1639 = vld [vmem:[%s1626 + $0x30] sm:$0xf]
    %v1640 = vld [vmem:[%s1626 + $0x34] sm:$0xf]
    %v1641 = vld [vmem:[%s1626 + $0x38] sm:$0xf]
    %v1642 = vld [vmem:[%s1626 + $0x3c] sm:$0xf]
    %v1643 = vld [vmem:[%s1626 + $0x40] sm:$0xf]
    %v1644 = vld [vmem:[%s1626 + $0x44] sm:$0xf]
    %v1645 = vld [vmem:[%s1626 + $0x48] sm:$0xf]
    %v1646 = vld [vmem:[%s1626 + $0x4c] sm:$0xf]
    %v1647 = vld [vmem:[%s1626 + $0x50] sm:$0xf]
    %v1648 = vld [vmem:[%s1626 + $0x54] sm:$0xf]
    %v1649 = vld [vmem:[%s1626 + $0x58] sm:$0xf]
    %v1650 = vld [vmem:[%s1626 + $0x5c] sm:$0xf]
    %v1651 = vld [vmem:[%s1626 + $0x60] sm:$0xf]
    %v1652 = vld [vmem:[%s1626 + $0x64] sm:$0xf]
    %v1653 = vld [vmem:[%s1626 + $0x68] sm:$0xf]
    %v1654 = vld [vmem:[%s1626 + $0x6c] sm:$0xf]
    %v1655 = vld [vmem:[%s1626 + $0x70] sm:$0xf]
    %v1656 = vld [vmem:[%s1626 + $0x74] sm:$0xf]
    %v1657 = vld [vmem:[%s1626 + $0x78] sm:$0xf]
    %v1658 = vld [vmem:[%s1626 + $0x7c] sm:$0xf]
    %v1691 = vunpack.c.l.b16 %v1627
    %v1692 = vunpack.c.l.b16 %v1628
    %v1693 = vunpack.c.l.b16 %v1629
    %v1694 = vunpack.c.l.b16 %v1630
    %v1695 = vunpack.c.l.b16 %v1631
    %v1696 = vunpack.c.l.b16 %v1632
    %v1697 = vunpack.c.l.b16 %v1633
    %v1698 = vunpack.c.l.b16 %v1634
    %v1699 = vunpack.c.l.b16 %v1635
    %v1700 = vunpack.c.l.b16 %v1636
    %v1701 = vunpack.c.l.b16 %v1637
    %v1702 = vunpack.c.l.b16 %v1638
    %v1703 = vunpack.c.l.b16 %v1639
    %v1704 = vunpack.c.l.b16 %v1640
    %v1705 = vunpack.c.l.b16 %v1641
    %v1706 = vunpack.c.l.b16 %v1642
    %v1707 = vunpack.c.l.b16 %v1643
    %v1708 = vunpack.c.l.b16 %v1644
    %v1709 = vunpack.c.l.b16 %v1645
    %v1710 = vunpack.c.l.b16 %v1646
    %v1711 = vunpack.c.l.b16 %v1647
    %v1712 = vunpack.c.l.b16 %v1648
    %v1713 = vunpack.c.l.b16 %v1649
    %v1714 = vunpack.c.l.b16 %v1650
    %v1715 = vunpack.c.l.b16 %v1651
    %v1716 = vunpack.c.l.b16 %v1652
    %v1717 = vunpack.c.l.b16 %v1653
    %v1718 = vunpack.c.l.b16 %v1654
    %v1719 = vunpack.c.l.b16 %v1655
    %v1720 = vunpack.c.l.b16 %v1656
    %v1721 = vunpack.c.l.b16 %v1657
    %v1722 = vunpack.c.l.b16 %v1658
    %v1723 = vpack.c.b16 %v1692, %v1691
    %v1724 = vpack.c.b16 %v1694, %v1693
    %v1725 = vpack.c.b16 %v1696, %v1695
    %v1726 = vpack.c.b16 %v1698, %v1697
    %v1727 = vpack.c.b16 %v1700, %v1699
    %v1728 = vpack.c.b16 %v1702, %v1701
    %v1729 = vpack.c.b16 %v1704, %v1703
    %v1730 = vpack.c.b16 %v1706, %v1705
    %v1731 = vpack.c.b16 %v1708, %v1707
    %v1732 = vpack.c.b16 %v1710, %v1709
    %v1733 = vpack.c.b16 %v1712, %v1711
    %v1734 = vpack.c.b16 %v1714, %v1713
    %v1735 = vpack.c.b16 %v1716, %v1715
    %v1736 = vpack.c.b16 %v1718, %v1717
    %v1737 = vpack.c.b16 %v1720, %v1719
    %v1738 = vpack.c.b16 %v1722, %v1721
    %1755 = vmatprep.subr.bf16.mxu0 0
    %1756 = vmatpush1.bf16.msra.mxu0 %v1723
    %1757 = vmatprep.subr.bf16.mxu0 0
    %1758 = vmatpush1.bf16.msra.mxu0 %v1724
    %1759 = vmatprep.subr.bf16.mxu0 0
    %1760 = vmatpush1.bf16.msra.mxu0 %v1725
    %1761 = vmatprep.subr.bf16.mxu0 0
    %1762 = vmatpush1.bf16.msra.mxu0 %v1726
    %1763 = vmatprep.subr.bf16.mxu0 0
    %1764 = vmatpush1.bf16.msra.mxu0 %v1727
    %1765 = vmatprep.subr.bf16.mxu0 0
    %1766 = vmatpush1.bf16.msra.mxu0 %v1728
    %1767 = vmatprep.subr.bf16.mxu0 0
    %1768 = vmatpush1.bf16.msra.mxu0 %v1729
    %1769 = vmatprep.subr.bf16.mxu0 0
    %1770 = vmatpush1.bf16.msra.mxu0 %v1730
    %1771 = vmatprep.subr.bf16.mxu0 0
    %1772 = vmatpush1.bf16.msra.mxu0 %v1731
    %1773 = vmatprep.subr.bf16.mxu0 0
    %1774 = vmatpush1.bf16.msra.mxu0 %v1732
    %1775 = vmatprep.subr.bf16.mxu0 0
    %1776 = vmatpush1.bf16.msra.mxu0 %v1733
    %1777 = vmatprep.subr.bf16.mxu0 0
    %1778 = vmatpush1.bf16.msra.mxu0 %v1734
    %1779 = vmatprep.subr.bf16.mxu0 0
    %1780 = vmatpush1.bf16.msra.mxu0 %v1735
    %1781 = vmatprep.subr.bf16.mxu0 0
    %1782 = vmatpush1.bf16.msra.mxu0 %v1736
    %1783 = vmatprep.subr.bf16.mxu0 0
    %1784 = vmatpush1.bf16.msra.mxu0 %v1737
    %1785 = vmatprep.subr.bf16.mxu0 0
    %1786 = vmatpush1.bf16.msra.mxu0 %v1738
    %1787 = vmatprep.mubr.bf16.mxu0 %v919
    %1788 = vmatmul.mubr.bf16.gmra.mrb[0].mxu0 %v918
    %v1789 = vpop.f32.mrb[0].mxu0
    %v1790 = vadd.f32 0.0, %v1789
    %v1791 = vpop.f32.mrb[0].mxu0
    %v1792 = vpop.f32.mrb[0].mxu0
    %v1793 = vpop.f32.mrb[0].mxu0
    %1794 = vdwg.mxu0
    %v1795 = vpack.c.bf16 %v1790, %v1790
    %v1797 = vsel %vm133, %v122, 0
    %v1800 = vsel %vm140, %v1795, 0
    %1802 = vmatprep.subr.bf16.mxu0 0
    %1803 = vmatpush1.bf16.msra.mxu0 %v1800
    %1804 = vmatprep.subr.bf16.mxu0 0
    %1805 = vmatpush1.bf16.msra.mxu0 0
    %1806 = vmatprep.subr.bf16.mxu0 0
    %1807 = vmatpush1.bf16.msra.mxu0 0
    %1808 = vmatprep.subr.bf16.mxu0 0
    %1809 = vmatpush1.bf16.msra.mxu0 0
    %1810 = vmatprep.subr.bf16.mxu0 0
    %1811 = vmatpush1.bf16.msra.mxu0 0
    %1812 = vmatprep.subr.bf16.mxu0 0
    %1813 = vmatpush1.bf16.msra.mxu0 0
    %1814 = vmatprep.subr.bf16.mxu0 0
    %1815 = vmatpush1.bf16.msra.mxu0 0
    %1816 = vmatprep.subr.bf16.mxu0 0
    %1817 = vmatpush1.bf16.msra.mxu0 0
    %1818 = vmatprep.subr.bf16.mxu0 0
    %1819 = vmatpush1.bf16.msra.mxu0 0
    %1820 = vmatprep.subr.bf16.mxu0 0
    %1821 = vmatpush1.bf16.msra.mxu0 0
    %1822 = vmatprep.subr.bf16.mxu0 0
    %1823 = vmatpush1.bf16.msra.mxu0 0
    %1824 = vmatprep.subr.bf16.mxu0 0
    %1825 = vmatpush1.bf16.msra.mxu0 0
    %1826 = vmatprep.subr.bf16.mxu0 0
    %1827 = vmatpush1.bf16.msra.mxu0 0
    %1828 = vmatprep.subr.bf16.mxu0 0
    %1829 = vmatpush1.bf16.msra.mxu0 0
    %1830 = vmatprep.subr.bf16.mxu0 0
    %1831 = vmatpush1.bf16.msra.mxu0 0
    %1832 = vmatprep.subr.bf16.mxu0 0
    %1833 = vmatpush1.bf16.msra.mxu0 0
    %1834 = vmatprep.mubr.bf16.mxu0 0
    %1835 = vmatmul.mubr.bf16.gmra.mrb[0].mxu0 %v1797
    %v1836 = vpop.f32.mrb[0].mxu0
    %v1837 = vadd.f32 0.0, %v1836
    %v1838 = vpop.f32.mrb[0].mxu0
    %v1839 = vpop.f32.mrb[0].mxu0
    %v1840 = vpop.f32.mrb[0].mxu0
    %1841 = vdwg.mxu0
    %v1843 = vsel %vm133, %v121, 0
    %v1846 = vsel %vm140, %v1625, 0
    %1848 = vmatprep.subr.bf16.mxu0 0
    %1849 = vmatpush1.bf16.msra.mxu0 %v1846
    %1850 = vmatprep.subr.bf16.mxu0 0
    %1851 = vmatpush1.bf16.msra.mxu0 0
    %1852 = vmatprep.subr.bf16.mxu0 0
    %1853 = vmatpush1.bf16.msra.mxu0 0
    %1854 = vmatprep.subr.bf16.mxu0 0
    %1855 = vmatpush1.bf16.msra.mxu0 0
    %1856 = vmatprep.subr.bf16.mxu0 0
    %1857 = vmatpush1.bf16.msra.mxu0 0
    %1858 = vmatprep.subr.bf16.mxu0 0
    %1859 = vmatpush1.bf16.msra.mxu0 0
    %1860 = vmatprep.subr.bf16.mxu0 0
    %1861 = vmatpush1.bf16.msra.mxu0 0
    %1862 = vmatprep.subr.bf16.mxu0 0
    %1863 = vmatpush1.bf16.msra.mxu0 0
    %1864 = vmatprep.subr.bf16.mxu0 0
    %1865 = vmatpush1.bf16.msra.mxu0 0
    %1866 = vmatprep.subr.bf16.mxu0 0
    %1867 = vmatpush1.bf16.msra.mxu0 0
    %1868 = vmatprep.subr.bf16.mxu0 0
    %1869 = vmatpush1.bf16.msra.mxu0 0
    %1870 = vmatprep.subr.bf16.mxu0 0
    %1871 = vmatpush1.bf16.msra.mxu0 0
    %1872 = vmatprep.subr.bf16.mxu0 0
    %1873 = vmatpush1.bf16.msra.mxu0 0
    %1874 = vmatprep.subr.bf16.mxu0 0
    %1875 = vmatpush1.bf16.msra.mxu0 0
    %1876 = vmatprep.subr.bf16.mxu0 0
    %1877 = vmatpush1.bf16.msra.mxu0 0
    %1878 = vmatprep.subr.bf16.mxu0 0
    %1879 = vmatpush1.bf16.msra.mxu0 0
    %1880 = vmatprep.mubr.bf16.mxu0 0
    %1881 = vmatmul.mubr.bf16.gmra.mrb[0].mxu0 %v1843
    %v1882 = vpop.f32.mrb[0].mxu0
    %v1883 = vadd.f32 %v1837, %v1882
    %v1884 = vpop.f32.mrb[0].mxu0
    %v1885 = vpop.f32.mrb[0].mxu0
    %v1886 = vpop.f32.mrb[0].mxu0
    %1887 = vdwg.mxu0
    %s1888 = scalar_lea.vmem %s8, 256
    %v1889 = vld [vmem:[%s1888] sm:$0xf]
    %v1890 = vld [vmem:[%s1888 + $0x4] sm:$0xf]
    %v1891 = vld [vmem:[%s1888 + $0x8] sm:$0xf]
    %v1892 = vld [vmem:[%s1888 + $0xc] sm:$0xf]
    %v1893 = vld [vmem:[%s1888 + $0x10] sm:$0xf]
    %v1894 = vld [vmem:[%s1888 + $0x14] sm:$0xf]
    %v1895 = vld [vmem:[%s1888 + $0x18] sm:$0xf]
    %v1896 = vld [vmem:[%s1888 + $0x1c] sm:$0xf]
    %v1897 = vld [vmem:[%s1888 + $0x20] sm:$0xf]
    %v1898 = vld [vmem:[%s1888 + $0x24] sm:$0xf]
    %v1899 = vld [vmem:[%s1888 + $0x28] sm:$0xf]
    %v1900 = vld [vmem:[%s1888 + $0x2c] sm:$0xf]
    %v1901 = vld [vmem:[%s1888 + $0x30] sm:$0xf]
    %v1902 = vld [vmem:[%s1888 + $0x34] sm:$0xf]
    %v1903 = vld [vmem:[%s1888 + $0x38] sm:$0xf]
    %v1904 = vld [vmem:[%s1888 + $0x3c] sm:$0xf]
    %v1905 = vld [vmem:[%s1888 + $0x40] sm:$0xf]
    %v1906 = vld [vmem:[%s1888 + $0x44] sm:$0xf]
    %v1907 = vld [vmem:[%s1888 + $0x48] sm:$0xf]
    %v1908 = vld [vmem:[%s1888 + $0x4c] sm:$0xf]
    %v1909 = vld [vmem:[%s1888 + $0x50] sm:$0xf]
    %v1910 = vld [vmem:[%s1888 + $0x54] sm:$0xf]
    %v1911 = vld [vmem:[%s1888 + $0x58] sm:$0xf]
    %v1912 = vld [vmem:[%s1888 + $0x5c] sm:$0xf]
    %v1913 = vld [vmem:[%s1888 + $0x60] sm:$0xf]
    %v1914 = vld [vmem:[%s1888 + $0x64] sm:$0xf]
    %v1915 = vld [vmem:[%s1888 + $0x68] sm:$0xf]
    %v1916 = vld [vmem:[%s1888 + $0x6c] sm:$0xf]
    %v1917 = vld [vmem:[%s1888 + $0x70] sm:$0xf]
    %v1918 = vld [vmem:[%s1888 + $0x74] sm:$0xf]
    %v1919 = vld [vmem:[%s1888 + $0x78] sm:$0xf]
    %v1920 = vld [vmem:[%s1888 + $0x7c] sm:$0xf]
    %v1953 = vunpack.c.l.b16 %v1889
    %v1954 = vunpack.c.l.b16 %v1890
    %v1955 = vunpack.c.l.b16 %v1891
    %v1956 = vunpack.c.l.b16 %v1892
    %v1957 = vunpack.c.l.b16 %v1893
    %v1958 = vunpack.c.l.b16 %v1894
    %v1959 = vunpack.c.l.b16 %v1895
    %v1960 = vunpack.c.l.b16 %v1896
    %v1961 = vunpack.c.l.b16 %v1897
    %v1962 = vunpack.c.l.b16 %v1898
    %v1963 = vunpack.c.l.b16 %v1899
    %v1964 = vunpack.c.l.b16 %v1900
    %v1965 = vunpack.c.l.b16 %v1901
    %v1966 = vunpack.c.l.b16 %v1902
    %v1967 = vunpack.c.l.b16 %v1903
    %v1968 = vunpack.c.l.b16 %v1904
    %v1969 = vunpack.c.l.b16 %v1905
    %v1970 = vunpack.c.l.b16 %v1906
    %v1971 = vunpack.c.l.b16 %v1907
    %v1972 = vunpack.c.l.b16 %v1908
    %v1973 = vunpack.c.l.b16 %v1909
    %v1974 = vunpack.c.l.b16 %v1910
    %v1975 = vunpack.c.l.b16 %v1911
    %v1976 = vunpack.c.l.b16 %v1912
    %v1977 = vunpack.c.l.b16 %v1913
    %v1978 = vunpack.c.l.b16 %v1914
    %v1979 = vunpack.c.l.b16 %v1915
    %v1980 = vunpack.c.l.b16 %v1916
    %v1981 = vunpack.c.l.b16 %v1917
    %v1982 = vunpack.c.l.b16 %v1918
    %v1983 = vunpack.c.l.b16 %v1919
    %v1984 = vunpack.c.l.b16 %v1920
    %v1985 = vpack.c.b16 %v1954, %v1953
    %v1986 = vpack.c.b16 %v1956, %v1955
    %v1987 = vpack.c.b16 %v1958, %v1957
    %v1988 = vpack.c.b16 %v1960, %v1959
    %v1989 = vpack.c.b16 %v1962, %v1961
    %v1990 = vpack.c.b16 %v1964, %v1963
    %v1991 = vpack.c.b16 %v1966, %v1965
    %v1992 = vpack.c.b16 %v1968, %v1967
    %v1993 = vpack.c.b16 %v1970, %v1969
    %v1994 = vpack.c.b16 %v1972, %v1971
    %v1995 = vpack.c.b16 %v1974, %v1973
    %v1996 = vpack.c.b16 %v1976, %v1975
    %v1997 = vpack.c.b16 %v1978, %v1977
    %v1998 = vpack.c.b16 %v1980, %v1979
    %v1999 = vpack.c.b16 %v1982, %v1981
    %v2000 = vpack.c.b16 %v1984, %v1983
    %2017 = vmatprep.subr.bf16.mxu0 0
    %2018 = vmatpush1.bf16.msra.mxu0 %v1985
    %2019 = vmatprep.subr.bf16.mxu0 0
    %2020 = vmatpush1.bf16.msra.mxu0 %v1986
    %2021 = vmatprep.subr.bf16.mxu0 0
    %2022 = vmatpush1.bf16.msra.mxu0 %v1987
    %2023 = vmatprep.subr.bf16.mxu0 0
    %2024 = vmatpush1.bf16.msra.mxu0 %v1988
    %2025 = vmatprep.subr.bf16.mxu0 0
    %2026 = vmatpush1.bf16.msra.mxu0 %v1989
    %2027 = vmatprep.subr.bf16.mxu0 0
    %2028 = vmatpush1.bf16.msra.mxu0 %v1990
    %2029 = vmatprep.subr.bf16.mxu0 0
    %2030 = vmatpush1.bf16.msra.mxu0 %v1991
    %2031 = vmatprep.subr.bf16.mxu0 0
    %2032 = vmatpush1.bf16.msra.mxu0 %v1992
    %2033 = vmatprep.subr.bf16.mxu0 0
    %2034 = vmatpush1.bf16.msra.mxu0 %v1993
    %2035 = vmatprep.subr.bf16.mxu0 0
    %2036 = vmatpush1.bf16.msra.mxu0 %v1994
    %2037 = vmatprep.subr.bf16.mxu0 0
    %2038 = vmatpush1.bf16.msra.mxu0 %v1995
    %2039 = vmatprep.subr.bf16.mxu0 0
    %2040 = vmatpush1.bf16.msra.mxu0 %v1996
    %2041 = vmatprep.subr.bf16.mxu0 0
    %2042 = vmatpush1.bf16.msra.mxu0 %v1997
    %2043 = vmatprep.subr.bf16.mxu0 0
    %2044 = vmatpush1.bf16.msra.mxu0 %v1998
    %2045 = vmatprep.subr.bf16.mxu0 0
    %2046 = vmatpush1.bf16.msra.mxu0 %v1999
    %2047 = vmatprep.subr.bf16.mxu0 0
    %2048 = vmatpush1.bf16.msra.mxu0 %v2000
    %2049 = vmatprep.mubr.bf16.mxu0 %v919
    %2050 = vmatmul.mubr.bf16.gmra.mrb[0].mxu0 %v918
    %v2051 = vpop.f32.mrb[0].mxu0
    %v2052 = vadd.f32 0.0, %v2051
    %v2053 = vpop.f32.mrb[0].mxu0
    %v2054 = vpop.f32.mrb[0].mxu0
    %v2055 = vpop.f32.mrb[0].mxu0
    %2056 = vdwg.mxu0
    %v2057 = vpack.c.bf16 %v2052, %v2052
    %v2059 = vsel %vm133, %v123, 0
    %v2062 = vsel %vm140, %v2057, 0
    %2064 = vmatprep.subr.bf16.mxu0 0
    %2065 = vmatpush1.bf16.msra.mxu0 %v2062
    %2066 = vmatprep.subr.bf16.mxu0 0
    %2067 = vmatpush1.bf16.msra.mxu0 0
    %2068 = vmatprep.subr.bf16.mxu0 0
    %2069 = vmatpush1.bf16.msra.mxu0 0
    %2070 = vmatprep.subr.bf16.mxu0 0
    %2071 = vmatpush1.bf16.msra.mxu0 0
    %2072 = vmatprep.subr.bf16.mxu0 0
    %2073 = vmatpush1.bf16.msra.mxu0 0
    %2074 = vmatprep.subr.bf16.mxu0 0
    %2075 = vmatpush1.bf16.msra.mxu0 0
    %2076 = vmatprep.subr.bf16.mxu0 0
    %2077 = vmatpush1.bf16.msra.mxu0 0
    %2078 = vmatprep.subr.bf16.mxu0 0
    %2079 = vmatpush1.bf16.msra.mxu0 0
    %2080 = vmatprep.subr.bf16.mxu0 0
    %2081 = vmatpush1.bf16.msra.mxu0 0
    %2082 = vmatprep.subr.bf16.mxu0 0
    %2083 = vmatpush1.bf16.msra.mxu0 0
    %2084 = vmatprep.subr.bf16.mxu0 0
    %2085 = vmatpush1.bf16.msra.mxu0 0
    %2086 = vmatprep.subr.bf16.mxu0 0
    %2087 = vmatpush1.bf16.msra.mxu0 0
    %2088 = vmatprep.subr.bf16.mxu0 0
    %2089 = vmatpush1.bf16.msra.mxu0 0
    %2090 = vmatprep.subr.bf16.mxu0 0
    %2091 = vmatpush1.bf16.msra.mxu0 0
    %2092 = vmatprep.subr.bf16.mxu0 0
    %2093 = vmatpush1.bf16.msra.mxu0 0
    %2094 = vmatprep.subr.bf16.mxu0 0
    %2095 = vmatpush1.bf16.msra.mxu0 0
    %2096 = vmatprep.mubr.bf16.mxu0 0
    %2097 = vmatmul.mubr.bf16.gmra.mrb[0].mxu0 %v2059
    %v2098 = vpop.f32.mrb[0].mxu0
    %v2099 = vadd.f32 0.0, %v2098
    %v2100 = vpop.f32.mrb[0].mxu0
    %v2101 = vpop.f32.mrb[0].mxu0
    %v2102 = vpop.f32.mrb[0].mxu0
    %2103 = vdwg.mxu0
    %v2104 = vadd.f32 %v1883, %v2099
    %v2105 = vld [vmem:[%s9] sm:$0x1]
    %v2107 = vlaneseq
    %v2108 = vshrl.u32 %v2107, 7
    %v2109 = vsub.s32 0, %v2108
    %v2110 = vrot.slane %v2105, %v2109
    %v2112 = vadd.f32 %v2104, %v2110
    %2113 = vst.msk [vmem:[#allocation5] sm:$0xff] %vm235, %v2112
    // Predicated region
    $region54: #{tpu_custom_call.1} parent=1 // pred_check
      _
    $region55: #{tpu_custom_call.1} parent=1 // pred_check_branch
      %2115 = sbr.rel (0) target = $region57
    $region56: #{tpu_custom_call.1} parent=1 // pred_region
      %s2117 = ssub.s32 128, 128
      %2118 = vsyncadd [#allocation4], %s2117
      %s2120 = sshll.u32 [#allocation5], 4
      %s2121 = int_to_ptr.vmem [resolvable:$true] %s2120
      %2123 = dma.vmem_to_hbm [thread:$0]  %s2121, 128, %s12, [#allocation4]
    $region57: #{tpu_custom_call.1} parent=1 // pred_fallthru
      _
    // Predicated region
    $region58: #{tpu_custom_call.1} parent=1 // pred_check
      _
    $region59: #{tpu_custom_call.1} parent=1 // pred_check_branch
      %2125 = sbr.rel (0) target = $region61
    $region60: #{tpu_custom_call.1} parent=1 // pred_region
      %s2127 = ssub.s32 1024, 1024
      %2128 = vsyncadd [#allocation7], %s2127
      %s2129 = sshll.u32 [#allocation6], 4
      %s2130 = int_to_ptr.vmem [resolvable:$true] %s2129
      %2135 = dma.vmem_to_hbm [thread:$0]  %s2130, 1024, %s13, [#allocation7], 512, 512, 32
    $region61: #{tpu_custom_call.1} parent=1 // pred_fallthru
      _
    // Predicated region
    $region62: #{tpu_custom_call.1} parent=1 // pred_check
      _
    $region63: #{tpu_custom_call.1} parent=1 // pred_check_branch
      %2137 = sbr.rel (0) target = $region65
    $region64: #{tpu_custom_call.1} parent=1 // pred_region
      %2138 = dma.done [#allocation4], 128
    $region65: #{tpu_custom_call.1} parent=1 // pred_fallthru
      _
    // Predicated region
    $region66: #{tpu_custom_call.1} parent=1 // pred_check
      _
    $region67: #{tpu_custom_call.1} parent=1 // pred_check_branch
      %2140 = sbr.rel (0) target = $region69
    $region68: #{tpu_custom_call.1} parent=1 // pred_region
      %2141 = dma.done [#allocation7], 1024
    $region69: #{tpu_custom_call.1} parent=1 // pred_fallthru
      _
    %2142 = vsyncpa [#allocation3], 1
    %2143 = vsyncpa [#allocation4], 1
    %2144 = vsyncpa [#allocation7], 1

</llo_original>
